<compile_context>
chip_gen: v7x
topology: tpu7x:2x2x1
jax: 0.10.0
libtpu: 0.0.40
codegen_flags: <defaults>
</compile_context>

<pallas_src>
import jax
import jax.numpy as jnp
from jax import lax
from jax.experimental import pallas as pl
from jax.experimental.pallas import tpu as pltpu

# ----------------------------- model hyper-params (tiny, synthetic) ---------
IMG_SIZE = 16          # image_encoder.img_size
PATCH = 4              # ViT patch size
GRID = IMG_SIZE // PATCH
NP = GRID * GRID       # number of patches / image-embedding tokens
D = 32                 # embedding dim
HEADS = 2
DH = D // HEADS
MLP = 64
NUM_MASK_TOKENS = 4    # 3 multimask outputs + 1 single-mask output
NUM_OUT_TOKENS = 1 + NUM_MASK_TOKENS
C1 = D // 4            # first upscale channels
C2 = D // 8            # second upscale channels (mask embedding dim)
NEG_INF = -1e9

PIXEL_MEAN = jnp.array([123.675, 116.28, 103.53], jnp.float32).reshape(3, 1, 1)
PIXEL_INV_STD = 1.0 / jnp.array([58.395, 57.12, 57.375], jnp.float32).reshape(3, 1, 1)
MASK_THRESHOLD = 0.0


# ----------------------------- in-kernel helpers (pure array math) ----------
def _ln(x, g, b, eps=1e-6):
    mu = jnp.mean(x, axis=-1, keepdims=True)
    var = jnp.mean((x - mu) ** 2, axis=-1, keepdims=True)
    return (x - mu) * lax.rsqrt(var + eps) * g + b


def _attn_core(q, k, v, o_w, o_b, key_bias=None):
    """q: (Tq, D), k/v: (Tk, D) already projected. Multi-head attn + out proj."""
    scale = float(DH) ** -0.5
    out = o_b                                     # (1, D) -> broadcasts
    for h in range(HEADS):                        # static unroll, HEADS=2
        qh = q[:, h * DH:(h + 1) * DH]
        kh = k[:, h * DH:(h + 1) * DH]
        vh = v[:, h * DH:(h + 1) * DH]
        s = lax.dot_general(qh, kh, (((1,), (1,)), ((), ())),
                            preferred_element_type=jnp.float32) * scale
        if key_bias is not None:                  # mask padded prompt tokens as keys
            s = s + key_bias
        m = jnp.max(s, axis=-1, keepdims=True)
        e = jnp.exp(s - m)
        l = jnp.sum(e, axis=-1, keepdims=True)
        oh = jnp.dot(e, vh, preferred_element_type=jnp.float32)
        oh = oh * pl.reciprocal(l, approx=True)
        # per-head slice of the output projection avoids a lane concat
        out = out + jnp.dot(oh, o_w[h * DH:(h + 1) * DH, :],
                            preferred_element_type=jnp.float32)
    return out


def _mha(q_in, k_in, v_in, qkv_w, qkv_b, o_w, o_b, key_bias=None):
    """Cross attention: q / k / v come from different inputs; packed weights."""
    q = jnp.dot(q_in, qkv_w[:, :D], preferred_element_type=jnp.float32) + qkv_b[:, :D]
    k = jnp.dot(k_in, qkv_w[:, D:2 * D], preferred_element_type=jnp.float32) + qkv_b[:, D:2 * D]
    v = jnp.dot(v_in, qkv_w[:, 2 * D:], preferred_element_type=jnp.float32) + qkv_b[:, 2 * D:]
    return _attn_core(q, k, v, o_w, o_b, key_bias)


def _mha_self(x, qkv_w, qkv_b, o_w, o_b, key_bias=None):
    """Self attention: single fused (D, 3D) matmul for Q, K and V."""
    qkv = jnp.dot(x, qkv_w, preferred_element_type=jnp.float32) + qkv_b
    return _attn_core(qkv[:, :D], qkv[:, D:2 * D], qkv[:, 2 * D:], o_w, o_b, key_bias)


def _full_spec(a):
    zeros = (0,) * a.ndim
    return pl.BlockSpec(a.shape, lambda *_: zeros)


# ----------------------------- fused image-encoder kernel -------------------
# packed (K, D) vector slab rows for the encoder
E_OB, E_L1G, E_L1B, E_L2G, E_L2B, E_MB2, E_NECKB = range(7)

ENC_KEYS = ["enc_patch_w", "enc_pos", "enc_qkv_w", "enc_qkv_b", "enc_o_w",
            "enc_vecs", "enc_mlp_w1", "enc_mlp_b1", "enc_mlp_w2", "enc_neck_w"]


def _encoder_kernel(patches_ref, patch_w, pos, qkv_w, qkv_b, o_w, vecs,
                    mlp_w1, mlp_b1, mlp_w2, neck_w, out_ref):
    v = vecs[...]
    row = lambda i: v[i:i + 1, :]
    # patch embed (+ pos emb; the patch bias is folded into the pos emb at init)
    tok = (jnp.dot(patches_ref[...], patch_w[...], preferred_element_type=jnp.float32)
           + pos[...])                                              # (NP, D)
    h = _ln(tok, row(E_L1G), row(E_L1B))
    tok = tok + _mha_self(h, qkv_w[...], qkv_b[...], o_w[...], row(E_OB))
    h = _ln(tok, row(E_L2G), row(E_L2B))
    h = jax.nn.gelu(jnp.dot(h, mlp_w1[...], preferred_element_type=jnp.float32)
                    + mlp_b1[...])
    tok = tok + jnp.dot(h, mlp_w2[...], preferred_element_type=jnp.float32) + row(E_MB2)
    # neck 1x1 conv as a matmul
    out_ref[...] = (jnp.dot(tok, neck_w[...], preferred_element_type=jnp.float32)
                    + row(E_NECKB))


def image_encoder(p, images):
    """images: (B, 3, IMG_SIZE, IMG_SIZE) -> token embeddings (B, NP, D)."""
    B = images.shape[0]
    patches = images.reshape(B, 3, GRID, PATCH, GRID, PATCH)
    patches = patches.transpose(0, 2, 4, 1, 3, 5).reshape(B, NP, 3 * PATCH * PATCH)
    weights = [p[k] for k in ENC_KEYS]
    return pl.pallas_call(
        _encoder_kernel,
        out_shape=jax.ShapeDtypeStruct((B, NP, D), jnp.float32),
        grid=(B,),
        in_specs=[pl.BlockSpec((None, NP, 3 * PATCH * PATCH), lambda b: (b, 0, 0))]
                 + [_full_spec(w) for w in weights],
        out_specs=pl.BlockSpec((None, NP, D), lambda b: (b, 0, 0)),
        compiler_params=pltpu.CompilerParams(dimension_semantics=("parallel",)),
    )(patches, *weights)


# ----------------------------- fused, batched mask-decoder kernel -----------
# packed (K, D) vector slab rows for the decoder
V_OB_SELF, V_OB_T2I, V_OB_I2T, V_OB_FIN = 0, 1, 2, 3
(V_N1G, V_N1B, V_N2G, V_N2B, V_N3G, V_N3B,
 V_N4G, V_N4B, V_NFG, V_NFB) = range(4, 14)
V_MLPB2, V_UP1B, V_IOUB1, V_NOMASK = 14, 15, 16, 17
DEC_NVEC = 18

DEC_KEYS = ["dec_qkv_w", "dec_qkv_b", "dec_o_w", "dec_vecs",
            "dec_mlp_w1", "dec_mlp_b1", "dec_mlp_w2",
            "up1_w", "up_ln", "up2_w", "up2_b",
            "hyper_w1", "hyper_b1", "hyper_w2", "hyper_b2",
            "iou_w1", "iou_w2", "iou_b2"]


def _decoder_kernel(img_idx_ref, tokens_ref, bias_ref, emb_ref, pos_ref,
                    qkv_w_ref, qkv_b_ref, o_w_ref, vecs_ref,
                    mlp_w1, mlp_b1, mlp_w2,
                    up1_w, up_ln, up2_w, up2_b,
                    hyp_w1, hyp_b1, hyp_w2, hyp_b2,
                    iou_w1, iou_w2, iou_b2,
                    masks_ref, iou_ref):
    del img_idx_ref                                  # consumed by the index maps only
    v = vecs_ref[...]
    row = lambda i: v[i:i + 1, :]

    tokens = tokens_ref[...]                         # (T, D) out tokens + padded prompts
    key_bias = bias_ref[...]                         # (1, T): 0 valid / -1e9 padded
    keys = emb_ref[...] + row(V_NOMASK)              # image tokens + no-mask dense prompt
    key_pe = pos_ref[...]                            # (NP, D)
    query_pe = tokens                                # SAM: query PE = initial prompt tokens

    def attn(i, q, k, val, kb=None):
        return _mha(q, k, val, qkv_w_ref[i], qkv_b_ref[i], o_w_ref[i],
                    row(V_OB_SELF + i), kb)

    # ---- two-way transformer block ----
    # self attention on tokens (first layer: no PE added, output replaces queries)
    queries = _mha_self(tokens, qkv_w_ref[0], qkv_b_ref[0], o_w_ref[0],
                        row(V_OB_SELF), key_bias)
    queries = _ln(queries, row(V_N1G), row(V_N1B))

    keys_pe = keys + key_pe                          # hoisted: reused by t2i and i2t
    q_pe = queries + query_pe
    a = attn(V_OB_T2I, q_pe, keys_pe, keys)          # cross attn: tokens -> image
    queries = _ln(queries + a, row(V_N2G), row(V_N2B))

    # MLP on tokens
    h = jnp.maximum(jnp.dot(queries, mlp_w1[...], preferred_element_type=jnp.float32)
                    + mlp_b1[...], 0.0)
    queries = _ln(queries + jnp.dot(h, mlp_w2[...], preferred_element_type=jnp.float32)
                  + row(V_MLPB2), row(V_N3G), row(V_N3B))

    q_pe = queries + query_pe
    a = attn(V_OB_I2T, keys_pe, q_pe, queries, key_bias)   # cross attn: image -> tokens
    keys = _ln(keys + a, row(V_N4G), row(V_N4B))

    a = attn(V_OB_FIN, q_pe, keys + key_pe, keys)    # final token -> image attention
    queries = _ln(queries + a, row(V_NFG), row(V_NFB))

    iou_tok = queries[0:1]                           # (1, D)
    mask_toks = queries[1:1 + NUM_MASK_TOKENS]       # (NUM, D)

    # ---- hypernetwork MLPs: concatenated / block-diagonal weights, no scratch ----
    h_all = jnp.maximum(jnp.dot(mask_toks, hyp_w1[...],
                                preferred_element_type=jnp.float32) + hyp_b1[...], 0.0)  # (NUM, 4*D)
    out_all = (jnp.dot(h_all, hyp_w2[...], preferred_element_type=jnp.float32)
               + hyp_b2[...])                                                            # (NUM, 4*C2)
    mm = lax.broadcasted_iota(jnp.int32, (NUM_MASK_TOKENS, NUM_MASK_TOKENS * C2), 0)
    hh = lax.broadcasted_iota(jnp.int32, (NUM_MASK_TOKENS, NUM_MASK_TOKENS * C2), 1) // C2
    sel = jnp.where(mm == hh, out_all, 0.0)          # keep the per-token diagonal block
    hyper_in = (sel[:, 0:C2] + sel[:, C2:2 * C2]
                + sel[:, 2 * C2:3 * C2] + sel[:, 3 * C2:4 * C2])                         # (NUM, C2)

    # ---- upscaling (two ConvTranspose2d(k=2,s=2) as per-sub-pixel linears) ----
    # up1 columns ordered (sub_y, sub_x, C1); up2 columns (sub_y2, sub_x2, C2).
    x1 = jnp.dot(keys, up1_w[...], preferred_element_type=jnp.float32) + row(V_UP1B)     # (NP, 4*C1)
    xs = jnp.concatenate([x1[:, s * C1:(s + 1) * C1] for s in range(4)], axis=0)         # (4*NP, C1)
    xs = jax.nn.gelu(_ln(xs, up_ln[0:1, :], up_ln[1:2, :]))
    ys = jax.nn.gelu(jnp.dot(xs, up2_w[...], preferred_element_type=jnp.float32)
                     + up2_b[...])                                                       # (4*NP, 4*C2)

    # ---- mask logits: 4 matmuls, ONE dense (NUM, 16*NP) lane write ----
    # column order of the output slab: s2*4*NP + s*NP + p  (unshuffled in JAX glue)
    blocks = [lax.dot_general(hyper_in, ys[:, s2 * C2:(s2 + 1) * C2],
                              (((1,), (1,)), ((), ())),
                              preferred_element_type=jnp.float32)
              for s2 in range(4)]                                                        # each (NUM, 4*NP)
    masks_ref[...] = jnp.concatenate(blocks, axis=1)                                     # (NUM, 16*NP)

    # ---- IoU prediction head ----
    ih = jnp.maximum(jnp.dot(iou_tok, iou_w1[...],
                             preferred_element_type=jnp.float32) + row(V_IOUB1), 0.0)
    iou_ref[...] = jnp.dot(ih, iou_w2[...], preferred_element_type=jnp.float32) + iou_b2[...]


def _decoder_call(p, tokens, bias, image_embeddings, pos, img_idx):
    """tokens: (N, T, D); bias: (N, 1, T); image_embeddings: (B, NP, D);
    img_idx: (N,) int32 image index per decoder item."""
    N, T, _ = tokens.shape
    weights = [p[k] for k in DEC_KEYS]
    grid_spec = pltpu.PrefetchScalarGridSpec(
        num_scalar_prefetch=1,
        grid=(N,),
        in_specs=[pl.BlockSpec((None, T, D), lambda b, ii: (b, 0, 0)),
                  pl.BlockSpec((None, 1, T), lambda b, ii: (b, 0, 0)),
                  # pick the right image embedding block per item (scalar prefetch)
                  pl.BlockSpec((None, NP, D), lambda b, ii: (ii[b], 0, 0)),
                  _full_spec(pos)]
                 + [_full_spec(w) for w in weights],
        out_specs=(pl.BlockSpec((None, NUM_MASK_TOKENS, 16 * NP), lambda b, ii: (b, 0, 0)),
                   pl.BlockSpec((None, 1, NUM_MASK_TOKENS), lambda b, ii: (b, 0, 0))),
    )
    masks, iou = pl.pallas_call(
        _decoder_kernel,
        out_shape=(jax.ShapeDtypeStruct((N, NUM_MASK_TOKENS, 16 * NP), jnp.float32),
                   jax.ShapeDtypeStruct((N, 1, NUM_MASK_TOKENS), jnp.float32)),
        grid_spec=grid_spec,
        compiler_params=pltpu.CompilerParams(dimension_semantics=("parallel",)),
    )(img_idx, tokens, bias, image_embeddings, pos, *weights)
    return masks, iou


# ----------------------------- parameter init (packed layouts) --------------
def init_params(seed=0):
    key = jax.random.PRNGKey(seed)
    keys = iter(jax.random.split(key, 96))

    def nrm(shape, scale=0.02):
        return scale * jax.random.normal(next(keys), shape, jnp.float32)

    p = {}
    # image encoder (tiny ViT), packed
    p["enc_patch_w"] = nrm((3 * PATCH * PATCH, D))
    p["enc_pos"] = nrm((NP, D))                      # patch bias (zeros) folded in here
    p["enc_qkv_w"] = nrm((D, 3 * D))
    p["enc_qkv_b"] = jnp.zeros((1, 3 * D), jnp.float32)
    p["enc_o_w"] = nrm((D, D))
    enc_vecs = jnp.zeros((7, D), jnp.float32)
    enc_vecs = enc_vecs.at[E_L1G].set(1.0).at[E_L2G].set(1.0)
    p["enc_vecs"] = enc_vecs
    p["enc_mlp_w1"] = nrm((D, MLP))
    p["enc_mlp_b1"] = jnp.zeros((1, MLP), jnp.float32)
    p["enc_mlp_w2"] = nrm((MLP, D))
    p["enc_neck_w"] = nrm((D, D))

    # prompt encoder
    p["pe_gauss"] = jax.random.normal(next(keys), (2, D // 2), jnp.float32)
    p["pt_emb_pos"] = nrm((D,))
    p["pt_emb_neg"] = nrm((D,))

    # mask decoder, packed
    p["iou_token"] = nrm((1, D))
    p["mask_tokens"] = nrm((NUM_MASK_TOKENS, D))
    p["dec_qkv_w"] = nrm((4, D, 3 * D))              # self, t2i, i2t, final
    p["dec_qkv_b"] = jnp.zeros((4, 1, 3 * D), jnp.float32)
    p["dec_o_w"] = nrm((4, D, D))
    vecs = jnp.zeros((DEC_NVEC, D), jnp.float32)
    for g_idx in (V_N1G, V_N2G, V_N3G, V_N4G, V_NFG):
        vecs = vecs.at[g_idx].set(1.0)
    vecs = vecs.at[V_NOMASK].set(nrm((D,)))
    p["dec_vecs"] = vecs
    p["dec_mlp_w1"] = nrm((D, MLP))
    p["dec_mlp_b1"] = jnp.zeros((1, MLP), jnp.float32)
    p["dec_mlp_w2"] = nrm((MLP, D))
    # ConvTranspose2d(k=2,s=2) as per-pixel linear; columns ordered (sub_y, sub_x, C)
    p["up1_w"] = nrm((D, 4 * C1))
    p["up_ln"] = jnp.stack([jnp.ones((C1,), jnp.float32), jnp.zeros((C1,), jnp.float32)])
    p["up2_w"] = nrm((C1, 4 * C2))
    p["up2_b"] = jnp.zeros((1, 4 * C2), jnp.float32)
    # hypernetwork MLPs: W1 concatenated along lanes, W2 block-diagonal
    hyper_w1 = nrm((NUM_MASK_TOKENS, D, D))
    hyper_w2 = nrm((NUM_MASK_TOKENS, D, C2))
    p["hyper_w1"] = jnp.concatenate([hyper_w1[m] for m in range(NUM_MASK_TOKENS)], axis=1)
    p["hyper_b1"] = jnp.zeros((1, NUM_MASK_TOKENS * D), jnp.float32)
    w2_bd = jnp.zeros((NUM_MASK_TOKENS * D, NUM_MASK_TOKENS * C2), jnp.float32)
    for m in range(NUM_MASK_TOKENS):
        w2_bd = w2_bd.at[m * D:(m + 1) * D, m * C2:(m + 1) * C2].set(hyper_w2[m])
    p["hyper_w2"] = w2_bd
    p["hyper_b2"] = jnp.zeros((1, NUM_MASK_TOKENS * C2), jnp.float32)
    p["iou_w1"] = nrm((D, D))
    p["iou_w2"] = nrm((D, NUM_MASK_TOKENS))
    p["iou_b2"] = jnp.zeros((1, NUM_MASK_TOKENS), jnp.float32)
    return p


# ----------------------------- glue (plain JAX) -----------------------------
def preprocess(image):
    """(x - mean)/std then zero-pad to IMG_SIZE square. image: (3, h, w)."""
    c, h, w = image.shape
    x = (image - PIXEL_MEAN) * PIXEL_INV_STD
    return jnp.pad(x, ((0, 0), (0, IMG_SIZE - h), (0, IMG_SIZE - w)))


def pe_encode(coords, gauss):
    """Random-Fourier positional encoding, coords in [0, 1]."""
    c = 2.0 * coords - 1.0
    proj = 2.0 * jnp.pi * (c @ gauss)
    return jnp.concatenate([jnp.sin(proj), jnp.cos(proj)], axis=-1)


def get_dense_pe_tokens(p):
    ys = (jnp.arange(GRID, dtype=jnp.float32) + 0.5) / GRID
    xs = (jnp.arange(GRID, dtype=jnp.float32) + 0.5) / GRID
    gx, gy = jnp.meshgrid(xs, ys)
    coords = jnp.stack([gx, gy], axis=-1)              # (GRID, GRID, 2)
    pe = pe_encode(coords, p["pe_gauss"])              # (GRID, GRID, D)
    return pe.reshape(NP, D)                           # token order = gy*GRID + gx


def prompt_encoder(p, points):
    """Returns sparse prompt embeddings (Bp, Npt, D)."""
    # TODO(synk): box and mask-input prompts are not implemented (points only).
    coords, labels = points
    pe = pe_encode(coords / IMG_SIZE, p["pe_gauss"])            # (Bp, Npt, D)
    lbl = jnp.where(labels[..., None] > 0,
                    p["pt_emb_pos"][None, None], p["pt_emb_neg"][None, None])
    return pe + lbl


def postprocess_masks(masks, input_size, original_size):
    # TODO(synk): bilinear interpolation (F.interpolate) has no clean Pallas
    # equivalent; done with jax.image.resize (half-pixel centers, equivalent to
    # align_corners=False up to minor boundary differences).
    Bp, C = masks.shape[:2]
    m = jax.image.resize(masks, (Bp, C, IMG_SIZE, IMG_SIZE), method="bilinear")
    m = m[..., :input_size[0], :input_size[1]]
    m = jax.image.resize(m, (Bp, C, original_size[0], original_size[1]),
                         method="bilinear")
    return m


def sam_forward(params, batched_input, multimask_output):
    input_images = jnp.stack([preprocess(r["image"]) for r in batched_input])
    image_embeddings = image_encoder(params, input_images)      # (B, NP, D)
    dense_pe = get_dense_pe_tokens(params)                      # (NP, D)

    # ---- flatten every (image, prompt-set) pair into ONE padded decoder batch ----
    max_pts = 0
    for rec in batched_input:
        if "point_coords" in rec:
            max_pts = max(max_pts, int(rec["point_coords"].shape[1]))

    img_idx, sparse_rows, valid_rows, per_record_bp = [], [], [], []
    for ri, rec in enumerate(batched_input):
        if "point_coords" in rec:
            coords, labels = rec["point_coords"], rec["point_labels"]
            bp, npt = int(coords.shape[0]), int(coords.shape[1])
            sp = prompt_encoder(params, (coords, labels))        # (bp, npt, D)
            sp = jnp.pad(sp, ((0, 0), (0, max_pts - npt), (0, 0)))
            val = jnp.pad(jnp.ones((bp, npt), jnp.float32), ((0, 0), (0, max_pts - npt)))
        else:
            bp = 1
            sp = jnp.zeros((1, max_pts, D), jnp.float32)
            val = jnp.zeros((1, max_pts), jnp.float32)
        per_record_bp.append(bp)
        img_idx.extend([ri] * bp)
        sparse_rows.append(sp)
        valid_rows.append(val)

    n_items = sum(per_record_bp)
    sparse_all = jnp.concatenate(sparse_rows, axis=0)            # (N, max_pts, D)
    valid_all = jnp.concatenate(valid_rows, axis=0)              # (N, max_pts)
    out_tok = jnp.concatenate([params["iou_token"], params["mask_tokens"]], axis=0)
    tokens = jnp.concatenate(
        [jnp.broadcast_to(out_tok[None], (n_items, NUM_OUT_TOKENS, D)), sparse_all],
        axis=1)                                                  # (N, T, D)
    pad_bias = jnp.where(valid_all > 0.5, 0.0, NEG_INF)
    bias = jnp.concatenate(
        [jnp.zeros((n_items, NUM_OUT_TOKENS), jnp.float32), pad_bias],
        axis=1)[:, None, :]                                      # (N, 1, T)
    img_idx = jnp.asarray(img_idx, jnp.int32)

    masks_blocked, iou = _decoder_call(params, tokens, bias, image_embeddings,
                                       dense_pe, img_idx)
    # undo the kernel's (sy2, sx2, sy, sx, gy, gx) blocked pixel ordering
    m = masks_blocked.reshape(n_items, NUM_MASK_TOKENS, 2, 2, 2, 2, GRID, GRID)
    m = m.transpose(0, 1, 6, 4, 2, 7, 5, 3).reshape(
        n_items, NUM_MASK_TOKENS, 4 * GRID, 4 * GRID)
    iou = iou.reshape(n_items, NUM_MASK_TOKENS)
    if multimask_output:
        m, iou = m[:, 1:], iou[:, 1:]
    else:
        m, iou = m[:, :1], iou[:, :1]

    outputs, pos = [], 0
    for rec, bp in zip(batched_input, per_record_bp):
        low_res = m[pos:pos + bp]
        iou_pred = iou[pos:pos + bp]
        pos += bp
        masks = postprocess_masks(low_res,
                                  input_size=rec["image"].shape[-2:],
                                  original_size=rec["original_size"])
        outputs.append({"masks": masks > MASK_THRESHOLD,
                        "iou_predictions": iou_pred,
                        "low_res_logits": low_res})
    return outputs


# ----------------------------- demo -----------------------------------------
if __name__ == "__main__":
    params = init_params(0)

    key = jax.random.PRNGKey(0)
    k1, k2, k3 = jax.random.split(key, 3)
    img1 = jax.random.uniform(k1, (3, 12, 14), jnp.float32) * 255.0
    img2 = jax.random.uniform(k2, (3, 16, 13), jnp.float32) * 255.0
    pts = jax.random.uniform(k3, (1, 2, 2), jnp.float32) * IMG_SIZE
    labels = jnp.array([[1, 0]], jnp.int32)

    batched_input = [
        {"image": img1, "original_size": (10, 11),
         "point_coords": pts, "point_labels": labels},
        {"image": img2, "original_size": (14, 12)},   # no prompts for this image
    ]

    outputs = sam_forward(params, batched_input, multimask_output=True)
    outputs = jax.block_until_ready(outputs)

    # basic sanity checks on shapes/dtypes
    assert outputs[0]["masks"].shape == (1, 3, 10, 11)
    assert outputs[0]["masks"].dtype == jnp.bool_
    assert outputs[0]["iou_predictions"].shape == (1, 3)
    assert outputs[0]["low_res_logits"].shape == (1, 3, 16, 16)
    assert outputs[1]["masks"].shape == (1, 3, 14, 12)
    for o in outputs:
        assert bool(jnp.all(jnp.isfinite(o["low_res_logits"])))

    print("KERNEL_OK")
</pallas_src>

<mosaic_0001>
module attributes {stable_mosaic.version = 11 : i64} {
  func.func @_encoder_kernel(%arg0: i32, %arg1: memref<1x16x48xf32, #tpu.memory_space<vmem>>, %arg2: memref<48x32xf32, #tpu.memory_space<vmem>>, %arg3: memref<16x32xf32, #tpu.memory_space<vmem>>, %arg4: memref<32x96xf32, #tpu.memory_space<vmem>>, %arg5: memref<1x96xf32, #tpu.memory_space<vmem>>, %arg6: memref<32x32xf32, #tpu.memory_space<vmem>>, %arg7: memref<7x32xf32, #tpu.memory_space<vmem>>, %arg8: memref<32x64xf32, #tpu.memory_space<vmem>>, %arg9: memref<1x64xf32, #tpu.memory_space<vmem>>, %arg10: memref<64x32xf32, #tpu.memory_space<vmem>>, %arg11: memref<32x32xf32, #tpu.memory_space<vmem>>, %arg12: memref<1x16x32xf32, #tpu.memory_space<vmem>>) attributes {dimension_semantics = [#tpu.dimension_semantics<parallel>], iteration_bounds = array<i64: 2>, scalar_prefetch = 0 : i64, scratch_operands = 0 : i64, tpu.core_type = #tpu.core_type<tc>, window_params = [{transform_indices = @transform_0, window_bounds = array<i64: 1, 16, 48>}, {pipeline_mode = #tpu.pipeline_mode<synchronous>, transform_indices = @transform_1, window_bounds = array<i64: 48, 32>}, {pipeline_mode = #tpu.pipeline_mode<synchronous>, transform_indices = @transform_2, window_bounds = array<i64: 16, 32>}, {pipeline_mode = #tpu.pipeline_mode<synchronous>, transform_indices = @transform_3, window_bounds = array<i64: 32, 96>}, {pipeline_mode = #tpu.pipeline_mode<synchronous>, transform_indices = @transform_4, window_bounds = array<i64: 1, 96>}, {pipeline_mode = #tpu.pipeline_mode<synchronous>, transform_indices = @transform_5, window_bounds = array<i64: 32, 32>}, {pipeline_mode = #tpu.pipeline_mode<synchronous>, transform_indices = @transform_6, window_bounds = array<i64: 7, 32>}, {pipeline_mode = #tpu.pipeline_mode<synchronous>, transform_indices = @transform_7, window_bounds = array<i64: 32, 64>}, {pipeline_mode = #tpu.pipeline_mode<synchronous>, transform_indices = @transform_8, window_bounds = array<i64: 1, 64>}, {pipeline_mode = #tpu.pipeline_mode<synchronous>, transform_indices = @transform_9, window_bounds = array<i64: 64, 32>}, {pipeline_mode = #tpu.pipeline_mode<synchronous>, transform_indices = @transform_10, window_bounds = array<i64: 32, 32>}, {transform_indices = @transform_11, window_bounds = array<i64: 1, 16, 32>}]} {
    %c0 = arith.constant 0 : index
    %c0_0 = arith.constant 0 : index
    %0 = vector.load %arg7[%c0, %c0_0] : memref<7x32xf32, #tpu.memory_space<vmem>>, vector<7x32xf32>
    %c0_1 = arith.constant 0 : index
    %c0_2 = arith.constant 0 : index
    %c0_3 = arith.constant 0 : index
    %1 = vector.load %arg1[%c0_1, %c0_2, %c0_3] : memref<1x16x48xf32, #tpu.memory_space<vmem>>, vector<1x16x48xf32>
    %2 = vector.shape_cast %1 : vector<1x16x48xf32> to vector<16x48xf32>
    %c0_4 = arith.constant 0 : index
    %c0_5 = arith.constant 0 : index
    %3 = vector.load %arg2[%c0_4, %c0_5] : memref<48x32xf32, #tpu.memory_space<vmem>>, vector<48x32xf32>
    %cst = arith.constant dense<0.000000e+00> : vector<16x32xf32>
    %4 = tpu.matmul %2, %3, %cst {dimension_numbers = #tpu.dot_dimension_numbers<[1], [0], [0], [1], [0, 0, 1, 1], [], []>} : vector<16x48xf32>, vector<48x32xf32>, vector<16x32xf32> -> vector<16x32xf32>
    %c0_6 = arith.constant 0 : index
    %c0_7 = arith.constant 0 : index
    %5 = vector.load %arg3[%c0_6, %c0_7] : memref<16x32xf32, #tpu.memory_space<vmem>>, vector<16x32xf32>
    %6 = arith.addf %4, %5 : vector<16x32xf32>
    %7 = vector.extract_strided_slice %0 {offsets = [1, 0], sizes = [1, 32], strides = [1, 1]} : vector<7x32xf32> to vector<1x32xf32>
    %8 = vector.extract_strided_slice %0 {offsets = [2, 0], sizes = [1, 32], strides = [1, 1]} : vector<7x32xf32> to vector<1x32xf32>
    %cst_8 = arith.constant dense<0.000000e+00> : vector<16xf32>
    %9 = vector.multi_reduction <add>, %6, %cst_8 [1] : vector<16x32xf32> to vector<16xf32>
    %10 = vector.shape_cast %9 : vector<16xf32> to vector<16x1xf32>
    %cst_9 = arith.constant 3.200000e+01 : f32
    %11 = vector.broadcast %cst_9 : f32 to vector<16x1xf32>
    %12 = arith.divf %10, %11 : vector<16x1xf32>
    %13 = vector.broadcast %12 : vector<16x1xf32> to vector<16x32xf32>
    %14 = arith.subf %6, %13 : vector<16x32xf32>
    %15 = arith.mulf %14, %14 : vector<16x32xf32>
    %cst_10 = arith.constant dense<0.000000e+00> : vector<16xf32>
    %16 = vector.multi_reduction <add>, %15, %cst_10 [1] : vector<16x32xf32> to vector<16xf32>
    %17 = vector.shape_cast %16 : vector<16xf32> to vector<16x1xf32>
    %cst_11 = arith.constant 3.200000e+01 : f32
    %18 = vector.broadcast %cst_11 : f32 to vector<16x1xf32>
    %19 = arith.divf %17, %18 : vector<16x1xf32>
    %20 = vector.broadcast %12 : vector<16x1xf32> to vector<16x32xf32>
    %21 = arith.subf %6, %20 : vector<16x32xf32>
    %cst_12 = arith.constant 9.99999997E-7 : f32
    %22 = vector.broadcast %cst_12 : f32 to vector<16x1xf32>
    %23 = arith.addf %19, %22 : vector<16x1xf32>
    %24 = math.rsqrt %23 : vector<16x1xf32>
    %25 = vector.broadcast %24 : vector<16x1xf32> to vector<16x32xf32>
    %26 = arith.mulf %21, %25 : vector<16x32xf32>
    %27 = vector.broadcast %7 : vector<1x32xf32> to vector<16x32xf32>
    %28 = arith.mulf %26, %27 : vector<16x32xf32>
    %29 = vector.broadcast %8 : vector<1x32xf32> to vector<16x32xf32>
    %30 = arith.addf %28, %29 : vector<16x32xf32>
    %c0_13 = arith.constant 0 : index
    %c0_14 = arith.constant 0 : index
    %31 = vector.load %arg4[%c0_13, %c0_14] : memref<32x96xf32, #tpu.memory_space<vmem>>, vector<32x96xf32>
    %c0_15 = arith.constant 0 : index
    %c0_16 = arith.constant 0 : index
    %32 = vector.load %arg5[%c0_15, %c0_16] : memref<1x96xf32, #tpu.memory_space<vmem>>, vector<1x96xf32>
    %c0_17 = arith.constant 0 : index
    %c0_18 = arith.constant 0 : index
    %33 = vector.load %arg6[%c0_17, %c0_18] : memref<32x32xf32, #tpu.memory_space<vmem>>, vector<32x32xf32>
    %34 = vector.extract_strided_slice %0 {offsets = [0, 0], sizes = [1, 32], strides = [1, 1]} : vector<7x32xf32> to vector<1x32xf32>
    %cst_19 = arith.constant dense<0.000000e+00> : vector<16x96xf32>
    %35 = tpu.matmul %30, %31, %cst_19 {dimension_numbers = #tpu.dot_dimension_numbers<[1], [0], [0], [1], [0, 0, 1, 1], [], []>} : vector<16x32xf32>, vector<32x96xf32>, vector<16x96xf32> -> vector<16x96xf32>
    %36 = vector.broadcast %32 : vector<1x96xf32> to vector<16x96xf32>
    %37 = arith.addf %35, %36 : vector<16x96xf32>
    %38 = vector.extract_strided_slice %37 {offsets = [0, 0], sizes = [16, 32], strides = [1, 1]} : vector<16x96xf32> to vector<16x32xf32>
    %39 = vector.extract_strided_slice %37 {offsets = [0, 32], sizes = [16, 32], strides = [1, 1]} : vector<16x96xf32> to vector<16x32xf32>
    %40 = vector.extract_strided_slice %37 {offsets = [0, 64], sizes = [16, 32], strides = [1, 1]} : vector<16x96xf32> to vector<16x32xf32>
    %41 = vector.extract_strided_slice %38 {offsets = [0, 0], sizes = [16, 16], strides = [1, 1]} : vector<16x32xf32> to vector<16x16xf32>
    %42 = vector.extract_strided_slice %39 {offsets = [0, 0], sizes = [16, 16], strides = [1, 1]} : vector<16x32xf32> to vector<16x16xf32>
    %43 = vector.extract_strided_slice %40 {offsets = [0, 0], sizes = [16, 16], strides = [1, 1]} : vector<16x32xf32> to vector<16x16xf32>
    %cst_20 = arith.constant dense<0.000000e+00> : vector<16x16xf32>
    %44 = tpu.matmul %41, %42, %cst_20 {dimension_numbers = #tpu.dot_dimension_numbers<[1], [1], [0], [0], [0, 0, 1, 0], [], []>} : vector<16x16xf32>, vector<16x16xf32>, vector<16x16xf32> -> vector<16x16xf32>
    %cst_21 = arith.constant 2.500000e-01 : f32
    %45 = vector.broadcast %cst_21 : f32 to vector<16x16xf32>
    %46 = arith.mulf %44, %45 : vector<16x16xf32>
    %cst_22 = arith.constant dense<0xFF800000> : vector<16xf32>
    %47 = vector.multi_reduction <maximumf>, %46, %cst_22 [1] : vector<16x16xf32> to vector<16xf32>
    %48 = vector.shape_cast %47 : vector<16xf32> to vector<16x1xf32>
    %49 = vector.broadcast %48 : vector<16x1xf32> to vector<16x16xf32>
    %50 = arith.subf %46, %49 : vector<16x16xf32>
    %51 = math.exp %50 : vector<16x16xf32>
    %cst_23 = arith.constant dense<0.000000e+00> : vector<16xf32>
    %52 = vector.multi_reduction <add>, %51, %cst_23 [1] : vector<16x16xf32> to vector<16xf32>
    %53 = vector.shape_cast %52 : vector<16xf32> to vector<16x1xf32>
    %cst_24 = arith.constant dense<0.000000e+00> : vector<16x16xf32>
    %54 = tpu.matmul %51, %43, %cst_24 {dimension_numbers = #tpu.dot_dimension_numbers<[1], [0], [0], [1], [0, 0, 1, 1], [], []>} : vector<16x16xf32>, vector<16x16xf32>, vector<16x16xf32> -> vector<16x16xf32>
    %55 = tpu.reciprocal %53 {approx = true} : vector<16x1xf32> -> vector<16x1xf32>
    %56 = vector.broadcast %55 : vector<16x1xf32> to vector<16x16xf32>
    %57 = arith.mulf %54, %56 : vector<16x16xf32>
    %58 = vector.extract_strided_slice %33 {offsets = [0, 0], sizes = [16, 32], strides = [1, 1]} : vector<32x32xf32> to vector<16x32xf32>
    %cst_25 = arith.constant dense<0.000000e+00> : vector<16x32xf32>
    %59 = tpu.matmul %57, %58, %cst_25 {dimension_numbers = #tpu.dot_dimension_numbers<[1], [0], [0], [1], [0, 0, 1, 1], [], []>} : vector<16x16xf32>, vector<16x32xf32>, vector<16x32xf32> -> vector<16x32xf32>
    %60 = vector.broadcast %34 : vector<1x32xf32> to vector<16x32xf32>
    %61 = arith.addf %60, %59 : vector<16x32xf32>
    %62 = vector.extract_strided_slice %38 {offsets = [0, 16], sizes = [16, 16], strides = [1, 1]} : vector<16x32xf32> to vector<16x16xf32>
    %63 = vector.extract_strided_slice %39 {offsets = [0, 16], sizes = [16, 16], strides = [1, 1]} : vector<16x32xf32> to vector<16x16xf32>
    %64 = vector.extract_strided_slice %40 {offsets = [0, 16], sizes = [16, 16], strides = [1, 1]} : vector<16x32xf32> to vector<16x16xf32>
    %cst_26 = arith.constant dense<0.000000e+00> : vector<16x16xf32>
    %65 = tpu.matmul %62, %63, %cst_26 {dimension_numbers = #tpu.dot_dimension_numbers<[1], [1], [0], [0], [0, 0, 1, 0], [], []>} : vector<16x16xf32>, vector<16x16xf32>, vector<16x16xf32> -> vector<16x16xf32>
    %cst_27 = arith.constant 2.500000e-01 : f32
    %66 = vector.broadcast %cst_27 : f32 to vector<16x16xf32>
    %67 = arith.mulf %65, %66 : vector<16x16xf32>
    %cst_28 = arith.constant dense<0xFF800000> : vector<16xf32>
    %68 = vector.multi_reduction <maximumf>, %67, %cst_28 [1] : vector<16x16xf32> to vector<16xf32>
    %69 = vector.shape_cast %68 : vector<16xf32> to vector<16x1xf32>
    %70 = vector.broadcast %69 : vector<16x1xf32> to vector<16x16xf32>
    %71 = arith.subf %67, %70 : vector<16x16xf32>
    %72 = math.exp %71 : vector<16x16xf32>
    %cst_29 = arith.constant dense<0.000000e+00> : vector<16xf32>
    %73 = vector.multi_reduction <add>, %72, %cst_29 [1] : vector<16x16xf32> to vector<16xf32>
    %74 = vector.shape_cast %73 : vector<16xf32> to vector<16x1xf32>
    %cst_30 = arith.constant dense<0.000000e+00> : vector<16x16xf32>
    %75 = tpu.matmul %72, %64, %cst_30 {dimension_numbers = #tpu.dot_dimension_numbers<[1], [0], [0], [1], [0, 0, 1, 1], [], []>} : vector<16x16xf32>, vector<16x16xf32>, vector<16x16xf32> -> vector<16x16xf32>
    %76 = tpu.reciprocal %74 {approx = true} : vector<16x1xf32> -> vector<16x1xf32>
    %77 = vector.broadcast %76 : vector<16x1xf32> to vector<16x16xf32>
    %78 = arith.mulf %75, %77 : vector<16x16xf32>
    %79 = vector.extract_strided_slice %33 {offsets = [16, 0], sizes = [16, 32], strides = [1, 1]} : vector<32x32xf32> to vector<16x32xf32>
    %cst_31 = arith.constant dense<0.000000e+00> : vector<16x32xf32>
    %80 = tpu.matmul %78, %79, %cst_31 {dimension_numbers = #tpu.dot_dimension_numbers<[1], [0], [0], [1], [0, 0, 1, 1], [], []>} : vector<16x16xf32>, vector<16x32xf32>, vector<16x32xf32> -> vector<16x32xf32>
    %81 = arith.addf %61, %80 : vector<16x32xf32>
    %82 = arith.addf %6, %81 : vector<16x32xf32>
    %83 = vector.extract_strided_slice %0 {offsets = [3, 0], sizes = [1, 32], strides = [1, 1]} : vector<7x32xf32> to vector<1x32xf32>
    %84 = vector.extract_strided_slice %0 {offsets = [4, 0], sizes = [1, 32], strides = [1, 1]} : vector<7x32xf32> to vector<1x32xf32>
    %cst_32 = arith.constant dense<0.000000e+00> : vector<16xf32>
    %85 = vector.multi_reduction <add>, %82, %cst_32 [1] : vector<16x32xf32> to vector<16xf32>
    %86 = vector.shape_cast %85 : vector<16xf32> to vector<16x1xf32>
    %cst_33 = arith.constant 3.200000e+01 : f32
    %87 = vector.broadcast %cst_33 : f32 to vector<16x1xf32>
    %88 = arith.divf %86, %87 : vector<16x1xf32>
    %89 = vector.broadcast %88 : vector<16x1xf32> to vector<16x32xf32>
    %90 = arith.subf %82, %89 : vector<16x32xf32>
    %91 = arith.mulf %90, %90 : vector<16x32xf32>
    %cst_34 = arith.constant dense<0.000000e+00> : vector<16xf32>
    %92 = vector.multi_reduction <add>, %91, %cst_34 [1] : vector<16x32xf32> to vector<16xf32>
    %93 = vector.shape_cast %92 : vector<16xf32> to vector<16x1xf32>
    %cst_35 = arith.constant 3.200000e+01 : f32
    %94 = vector.broadcast %cst_35 : f32 to vector<16x1xf32>
    %95 = arith.divf %93, %94 : vector<16x1xf32>
    %96 = vector.broadcast %88 : vector<16x1xf32> to vector<16x32xf32>
    %97 = arith.subf %82, %96 : vector<16x32xf32>
    %cst_36 = arith.constant 9.99999997E-7 : f32
    %98 = vector.broadcast %cst_36 : f32 to vector<16x1xf32>
    %99 = arith.addf %95, %98 : vector<16x1xf32>
    %100 = math.rsqrt %99 : vector<16x1xf32>
    %101 = vector.broadcast %100 : vector<16x1xf32> to vector<16x32xf32>
    %102 = arith.mulf %97, %101 : vector<16x32xf32>
    %103 = vector.broadcast %83 : vector<1x32xf32> to vector<16x32xf32>
    %104 = arith.mulf %102, %103 : vector<16x32xf32>
    %105 = vector.broadcast %84 : vector<1x32xf32> to vector<16x32xf32>
    %106 = arith.addf %104, %105 : vector<16x32xf32>
    %c0_37 = arith.constant 0 : index
    %c0_38 = arith.constant 0 : index
    %107 = vector.load %arg8[%c0_37, %c0_38] : memref<32x64xf32, #tpu.memory_space<vmem>>, vector<32x64xf32>
    %cst_39 = arith.constant dense<0.000000e+00> : vector<16x64xf32>
    %108 = tpu.matmul %106, %107, %cst_39 {dimension_numbers = #tpu.dot_dimension_numbers<[1], [0], [0], [1], [0, 0, 1, 1], [], []>} : vector<16x32xf32>, vector<32x64xf32>, vector<16x64xf32> -> vector<16x64xf32>
    %c0_40 = arith.constant 0 : index
    %c0_41 = arith.constant 0 : index
    %109 = vector.load %arg9[%c0_40, %c0_41] : memref<1x64xf32, #tpu.memory_space<vmem>>, vector<1x64xf32>
    %110 = vector.broadcast %109 : vector<1x64xf32> to vector<16x64xf32>
    %111 = arith.addf %108, %110 : vector<16x64xf32>
    %112 = arith.mulf %111, %111 : vector<16x64xf32>
    %113 = arith.mulf %111, %112 : vector<16x64xf32>
    %cst_42 = arith.constant 4.471500e-02 : f32
    %114 = vector.broadcast %cst_42 : f32 to vector<16x64xf32>
    %115 = arith.mulf %114, %113 : vector<16x64xf32>
    %116 = arith.addf %111, %115 : vector<16x64xf32>
    %cst_43 = arith.constant 0.797884583 : f32
    %117 = vector.broadcast %cst_43 : f32 to vector<16x64xf32>
    %118 = arith.mulf %117, %116 : vector<16x64xf32>
    %119 = math.tanh %118 : vector<16x64xf32>
    %cst_44 = arith.constant 1.000000e+00 : f32
    %120 = vector.broadcast %cst_44 : f32 to vector<16x64xf32>
    %121 = arith.addf %120, %119 : vector<16x64xf32>
    %cst_45 = arith.constant 5.000000e-01 : f32
    %122 = vector.broadcast %cst_45 : f32 to vector<16x64xf32>
    %123 = arith.mulf %122, %121 : vector<16x64xf32>
    %124 = arith.mulf %111, %123 : vector<16x64xf32>
    %c0_46 = arith.constant 0 : index
    %c0_47 = arith.constant 0 : index
    %125 = vector.load %arg10[%c0_46, %c0_47] : memref<64x32xf32, #tpu.memory_space<vmem>>, vector<64x32xf32>
    %cst_48 = arith.constant dense<0.000000e+00> : vector<16x32xf32>
    %126 = tpu.matmul %124, %125, %cst_48 {dimension_numbers = #tpu.dot_dimension_numbers<[1], [0], [0], [1], [0, 0, 1, 1], [], []>} : vector<16x64xf32>, vector<64x32xf32>, vector<16x32xf32> -> vector<16x32xf32>
    %127 = arith.addf %82, %126 : vector<16x32xf32>
    %128 = vector.extract_strided_slice %0 {offsets = [5, 0], sizes = [1, 32], strides = [1, 1]} : vector<7x32xf32> to vector<1x32xf32>
    %129 = vector.broadcast %128 : vector<1x32xf32> to vector<16x32xf32>
    %130 = arith.addf %127, %129 : vector<16x32xf32>
    %c0_49 = arith.constant 0 : index
    %c0_50 = arith.constant 0 : index
    %131 = vector.load %arg11[%c0_49, %c0_50] : memref<32x32xf32, #tpu.memory_space<vmem>>, vector<32x32xf32>
    %cst_51 = arith.constant dense<0.000000e+00> : vector<16x32xf32>
    %132 = tpu.matmul %130, %131, %cst_51 {dimension_numbers = #tpu.dot_dimension_numbers<[1], [0], [0], [1], [0, 0, 1, 1], [], []>} : vector<16x32xf32>, vector<32x32xf32>, vector<16x32xf32> -> vector<16x32xf32>
    %133 = vector.extract_strided_slice %0 {offsets = [6, 0], sizes = [1, 32], strides = [1, 1]} : vector<7x32xf32> to vector<1x32xf32>
    %134 = vector.broadcast %133 : vector<1x32xf32> to vector<16x32xf32>
    %135 = arith.addf %132, %134 : vector<16x32xf32>
    %c0_52 = arith.constant 0 : index
    %c0_53 = arith.constant 0 : index
    %c0_54 = arith.constant 0 : index
    %136 = vector.load %arg12[%c0_52, %c0_53, %c0_54] : memref<1x16x32xf32, #tpu.memory_space<vmem>>, vector<1x16x32xf32>
    %137 = vector.shape_cast %136 : vector<1x16x32xf32> to vector<16x32xf32>
    %138 = vector.shape_cast %135 : vector<16x32xf32> to vector<1x16x32xf32>
    tpu.vector_store %arg12[%c0_52, %c0_53, %c0_54], %138 {strides = array<i32>} : memref<1x16x32xf32, #tpu.memory_space<vmem>>, vector<1x16x32xf32>,
    return
  }
  func.func @transform_0(%arg0: i32) -> (i32, i32, i32) {
    %c0_i32 = arith.constant 0 : i32
    %c0_i32_0 = arith.constant 0 : i32
    %c0_i32_1 = arith.constant 0 : i32
    return %arg0, %c0_i32, %c0_i32_0 : i32, i32, i32
  }
  func.func @transform_1(%arg0: i32) -> (i32, i32) {
    %c0_i32 = arith.constant 0 : i32
    %c0_i32_0 = arith.constant 0 : i32
    %c0_i32_1 = arith.constant 0 : i32
    return %c0_i32, %c0_i32_0 : i32, i32
  }
  func.func @transform_2(%arg0: i32) -> (i32, i32) {
    %c0_i32 = arith.constant 0 : i32
    %c0_i32_0 = arith.constant 0 : i32
    %c0_i32_1 = arith.constant 0 : i32
    return %c0_i32, %c0_i32_0 : i32, i32
  }
  func.func @transform_3(%arg0: i32) -> (i32, i32) {
    %c0_i32 = arith.constant 0 : i32
    %c0_i32_0 = arith.constant 0 : i32
    %c0_i32_1 = arith.constant 0 : i32
    return %c0_i32, %c0_i32_0 : i32, i32
  }
  func.func @transform_4(%arg0: i32) -> (i32, i32) {
    %c0_i32 = arith.constant 0 : i32
    %c0_i32_0 = arith.constant 0 : i32
    %c0_i32_1 = arith.constant 0 : i32
    return %c0_i32, %c0_i32_0 : i32, i32
  }
  func.func @transform_5(%arg0: i32) -> (i32, i32) {
    %c0_i32 = arith.constant 0 : i32
    %c0_i32_0 = arith.constant 0 : i32
    %c0_i32_1 = arith.constant 0 : i32
    return %c0_i32, %c0_i32_0 : i32, i32
  }
  func.func @transform_6(%arg0: i32) -> (i32, i32) {
    %c0_i32 = arith.constant 0 : i32
    %c0_i32_0 = arith.constant 0 : i32
    %c0_i32_1 = arith.constant 0 : i32
    return %c0_i32, %c0_i32_0 : i32, i32
  }
  func.func @transform_7(%arg0: i32) -> (i32, i32) {
    %c0_i32 = arith.constant 0 : i32
    %c0_i32_0 = arith.constant 0 : i32
    %c0_i32_1 = arith.constant 0 : i32
    return %c0_i32, %c0_i32_0 : i32, i32
  }
  func.func @transform_8(%arg0: i32) -> (i32, i32) {
    %c0_i32 = arith.constant 0 : i32
    %c0_i32_0 = arith.constant 0 : i32
    %c0_i32_1 = arith.constant 0 : i32
    return %c0_i32, %c0_i32_0 : i32, i32
  }
  func.func @transform_9(%arg0: i32) -> (i32, i32) {
    %c0_i32 = arith.constant 0 : i32
    %c0_i32_0 = arith.constant 0 : i32
    %c0_i32_1 = arith.constant 0 : i32
    return %c0_i32, %c0_i32_0 : i32, i32
  }
  func.func @transform_10(%arg0: i32) -> (i32, i32) {
    %c0_i32 = arith.constant 0 : i32
    %c0_i32_0 = arith.constant 0 : i32
    %c0_i32_1 = arith.constant 0 : i32
    return %c0_i32, %c0_i32_0 : i32, i32
  }
  func.func @transform_11(%arg0: i32) -> (i32, i32, i32) {
    %c0_i32 = arith.constant 0 : i32
    %c0_i32_0 = arith.constant 0 : i32
    %c0_i32_1 = arith.constant 0 : i32
    return %arg0, %c0_i32, %c0_i32_0 : i32, i32, i32
  }
}

</mosaic_0001>

<llo_original>
// kernel: tpu_custom_call.1
$region0: #{tpu_custom_call.1}
  #allocation0 [shape = 'u32[]', space=smem, size = 0x4, offset = 0x4, fixed_abs, tag = 'smem constant byte address 0x4 - core index']
  #allocation1 [shape = 'u32[144,128]{1,0:T(1,128)}', space=vmem, size = 0x12000, scoped, tag = 'internal scratch']
  %s0 = inlined_call_operand.vmem [shape: f32[2,16,48], index: 0, kind: input, shape index: {}]
  %s1 = inlined_call_operand.vmem [shape: f32[48,32], index: 1, kind: input, shape index: {}]
  %s2 = inlined_call_operand.hbm [shape: f32[16,32], index: 2, kind: input, shape index: {}]
  %s3 = inlined_call_operand.vmem [shape: f32[32,96], index: 3, kind: input, shape index: {}]
  %s4 = inlined_call_operand.vmem [shape: f32[1,96], index: 4, kind: input, shape index: {}]
  %s5 = inlined_call_operand.vmem [shape: f32[32,32], index: 5, kind: input, shape index: {}]
  %s6 = inlined_call_operand.hbm [shape: f32[7,32], index: 6, kind: input, shape index: {}]
  %s7 = inlined_call_operand.vmem [shape: f32[32,64], index: 7, kind: input, shape index: {}]
  %s8 = inlined_call_operand.vmem [shape: f32[1,64], index: 8, kind: input, shape index: {}]
  %s9 = inlined_call_operand.vmem [shape: f32[64,32], index: 9, kind: input, shape index: {}]
  %s10 = inlined_call_operand.vmem [shape: f32[32,32], index: 10, kind: input, shape index: {}]
  %s11 = inlined_call_operand.hbm [shape: f32[2,16,32], index: 11, kind: output, shape index: {}]
  %s12 = sld [smem:[#allocation0]]
  $region85: #{tpu_custom_call.1} parent=0
    _
  %s14 = ssub.s32 1, %s12
  %s15 = scalar_select 0, %s14, %s12
  $region1: #{tpu_custom_call.1} parent=0
    #allocation2 [shape = 'u8[8192]{0}', space=vmem, size = 0x2000, scoped, tag = 'input window, operand 2, single buffered']
    #allocation3 [shape = 's32[2]{0}', space=sflag, size = 0x8, scoped, tag = 'scoped memory for tpu_custom_call.1']
    #allocation4 [shape = 's32[2]{0}', space=sflag, size = 0x8, scoped, tag = 'scoped memory for tpu_custom_call.1']
    #allocation5 [shape = 'u8[4096]{0}', space=vmem, size = 0x1000, scoped, tag = 'input window, operand 6, single buffered']
    #allocation6 [shape = 's32[1]{0}', space=sflag, size = 0x4, scoped, tag = 'scoped memory for tpu_custom_call.1']
    #allocation7 [shape = 'u8[16384]{0}', space=vmem, size = 0x4000, scoped, tag = 'output window, operand 0']
    %16 = vsyncpa [#allocation3], 0
    %17 = vsyncpa [#allocation6], 0
    %18 = vsyncpa [#allocation4], 0
    %s19 = scalar_lea.sflag [#allocation4], 1
    %20 = vsyncpa %s19, 0
    loop: start=0, step=1, limit=4
    $region2: #{tpu_custom_call.1} parent=1 // loop_pre_header
      _
    $region3: #{tpu_custom_call.1} parent=1 // loop_header
      %s22 = sphi 0, %s26
      %p23 = scmp.ge.s32.totalorder %s22, 4
      %s32 = sphi 0, %s34
      %s35 = sphi 0, %s32
      %s36 = sphi 0, %s35
      %s52 = sphi 0, %s36
      %s56 = sphi 0, %s56
      %s58 = sphi 0, %s56
      %s59 = sphi 0, %s58
      %s73 = sphi 0, %s59
      %s77 = sphi 0, %s77
      %s79 = sphi 0, %s77
      %s80 = sphi 0, %s79
      %s94 = sphi 0, %s80
      %s98 = sphi 0, %s98
      %s100 = sphi 0, %s98
      %s101 = sphi 0, %s100
      %s115 = sphi 0, %s101
      %s119 = sphi 0, %s119
      %s121 = sphi 0, %s119
      %s122 = sphi 0, %s121
      %s136 = sphi 0, %s122
      %s140 = sphi 0, %s140
      %s142 = sphi 0, %s140
      %s143 = sphi 0, %s142
      %s157 = sphi 0, %s143
      %s161 = sphi 0, %s161
      %s163 = sphi 0, %s161
      %s164 = sphi 0, %s163
      %s178 = sphi 0, %s164
      %s182 = sphi 0, %s182
      %s184 = sphi 0, %s182
      %s185 = sphi 0, %s184
      %s199 = sphi 0, %s185
      %s203 = sphi 0, %s203
      %s205 = sphi 0, %s203
      %s206 = sphi 0, %s205
      %s220 = sphi 0, %s206
      %s224 = sphi 0, %s224
      %s226 = sphi 0, %s224
      %s227 = sphi 0, %s226
      %s241 = sphi 0, %s227
      %s245 = sphi 0, %s245
      %s247 = sphi 0, %s245
      %s248 = sphi 0, %s247
      %s262 = sphi 0, %s248
      %s268 = sphi 0, %s270
      %s271 = sphi 0, %s268
      %s272 = sphi 0, %s271
      %s288 = sphi 0, %s272
    $region4: #{tpu_custom_call.1} parent=1 // loop_header_branch
      %25 = sbr.rel (%p23) target = $region8
    $region5: #{tpu_custom_call.1} parent=1 // loop_body
      %s27 = ssub.s32 %s22, 1
      %s28 = ssub.s32 %s22, 2
      %s29 = sadd.s32 %s22, 1
      %s30 = ssub.s32 %s22, %s29
      %p31 = scmp.eq.s32.totalorder %s30, 0
      %s33 = sadd.s32 %s32, 1
      %s34 = scalar_select %p31, %s32, %s33
      %p37 = pneg %p31
      %p38 = scmp.eq.s32.totalorder %s22, 1
      %p39 = por %p37, %p38
      %p40 = scmp.ne.s32.totalorder %s32, %s35
      %p41 = scmp.eq.s32.totalorder %s22, 0
      %p42 = por %p40, %p41
      %p43 = scmp.ne.s32.totalorder %s32, %s35
      %p44 = scmp.eq.s32.totalorder %s27, 1
      %p45 = por %p43, %p44
      %p46 = scmp.ne.s32.totalorder %s35, %s36
      %p47 = scmp.eq.s32.totalorder %s27, 0
      %p48 = por %p46, %p47
      %p49 = scmp.ne.s32.totalorder %s35, %s36
      %p50 = scmp.eq.s32.totalorder %s28, 1
      %p51 = por %p49, %p50
      %p53 = scmp.ne.s32.totalorder %s36, %s52
      %p54 = scmp.eq.s32.totalorder %s28, 0
      %p55 = por %p53, %p54
      %s57 = sadd.s32 %s56, 1
      %p60 = scmp.eq.s32.totalorder %s22, 1
      %p61 = scmp.ne.s32.totalorder %s56, %s58
      %p62 = scmp.eq.s32.totalorder %s22, 0
      %p63 = por %p61, %p62
      %p64 = scmp.ne.s32.totalorder %s56, %s58
      %p65 = scmp.eq.s32.totalorder %s27, 1
      %p66 = por %p64, %p65
      %p67 = scmp.ne.s32.totalorder %s58, %s59
      %p68 = scmp.eq.s32.totalorder %s27, 0
      %p69 = por %p67, %p68
      %p70 = scmp.ne.s32.totalorder %s58, %s59
      %p71 = scmp.eq.s32.totalorder %s28, 1
      %p72 = por %p70, %p71
      %p74 = scmp.ne.s32.totalorder %s59, %s73
      %p75 = scmp.eq.s32.totalorder %s28, 0
      %p76 = por %p74, %p75
      %s78 = sadd.s32 %s77, 1
      %p81 = scmp.eq.s32.totalorder %s22, 1
      %p82 = scmp.ne.s32.totalorder %s77, %s79
      %p83 = scmp.eq.s32.totalorder %s22, 0
      %p84 = por %p82, %p83
      %p85 = scmp.ne.s32.totalorder %s77, %s79
      %p86 = scmp.eq.s32.totalorder %s27, 1
      %p87 = por %p85, %p86
      %p88 = scmp.ne.s32.totalorder %s79, %s80
      %p89 = scmp.eq.s32.totalorder %s27, 0
      %p90 = por %p88, %p89
      %p91 = scmp.ne.s32.totalorder %s79, %s80
      %p92 = scmp.eq.s32.totalorder %s28, 1
      %p93 = por %p91, %p92
      %p95 = scmp.ne.s32.totalorder %s80, %s94
      %p96 = scmp.eq.s32.totalorder %s28, 0
      %p97 = por %p95, %p96
      %s99 = sadd.s32 %s98, 1
      %p102 = scmp.eq.s32.totalorder %s22, 1
      %p103 = scmp.ne.s32.totalorder %s98, %s100
      %p104 = scmp.eq.s32.totalorder %s22, 0
      %p105 = por %p103, %p104
      %p106 = scmp.ne.s32.totalorder %s98, %s100
      %p107 = scmp.eq.s32.totalorder %s27, 1
      %p108 = por %p106, %p107
      %p109 = scmp.ne.s32.totalorder %s100, %s101
      %p110 = scmp.eq.s32.totalorder %s27, 0
      %p111 = por %p109, %p110
      %p112 = scmp.ne.s32.totalorder %s100, %s101
      %p113 = scmp.eq.s32.totalorder %s28, 1
      %p114 = por %p112, %p113
      %p116 = scmp.ne.s32.totalorder %s101, %s115
      %p117 = scmp.eq.s32.totalorder %s28, 0
      %p118 = por %p116, %p117
      %s120 = sadd.s32 %s119, 1
      %p123 = scmp.eq.s32.totalorder %s22, 1
      %p124 = scmp.ne.s32.totalorder %s119, %s121
      %p125 = scmp.eq.s32.totalorder %s22, 0
      %p126 = por %p124, %p125
      %p127 = scmp.ne.s32.totalorder %s119, %s121
      %p128 = scmp.eq.s32.totalorder %s27, 1
      %p129 = por %p127, %p128
      %p130 = scmp.ne.s32.totalorder %s121, %s122
      %p131 = scmp.eq.s32.totalorder %s27, 0
      %p132 = por %p130, %p131
      %p133 = scmp.ne.s32.totalorder %s121, %s122
      %p134 = scmp.eq.s32.totalorder %s28, 1
      %p135 = por %p133, %p134
      %p137 = scmp.ne.s32.totalorder %s122, %s136
      %p138 = scmp.eq.s32.totalorder %s28, 0
      %p139 = por %p137, %p138
      %s141 = sadd.s32 %s140, 1
      %p144 = scmp.eq.s32.totalorder %s22, 1
      %p145 = scmp.ne.s32.totalorder %s140, %s142
      %p146 = scmp.eq.s32.totalorder %s22, 0
      %p147 = por %p145, %p146
      %p148 = scmp.ne.s32.totalorder %s140, %s142
      %p149 = scmp.eq.s32.totalorder %s27, 1
      %p150 = por %p148, %p149
      %p151 = scmp.ne.s32.totalorder %s142, %s143
      %p152 = scmp.eq.s32.totalorder %s27, 0
      %p153 = por %p151, %p152
      %p154 = scmp.ne.s32.totalorder %s142, %s143
      %p155 = scmp.eq.s32.totalorder %s28, 1
      %p156 = por %p154, %p155
      %p158 = scmp.ne.s32.totalorder %s143, %s157
      %p159 = scmp.eq.s32.totalorder %s28, 0
      %p160 = por %p158, %p159
      %s162 = sadd.s32 %s161, 1
      %p165 = scmp.eq.s32.totalorder %s22, 1
      %p166 = scmp.ne.s32.totalorder %s161, %s163
      %p167 = scmp.eq.s32.totalorder %s22, 0
      %p168 = por %p166, %p167
      %p169 = scmp.ne.s32.totalorder %s161, %s163
      %p170 = scmp.eq.s32.totalorder %s27, 1
      %p171 = por %p169, %p170
      %p172 = scmp.ne.s32.totalorder %s163, %s164
      %p173 = scmp.eq.s32.totalorder %s27, 0
      %p174 = por %p172, %p173
      %p175 = scmp.ne.s32.totalorder %s163, %s164
      %p176 = scmp.eq.s32.totalorder %s28, 1
      %p177 = por %p175, %p176
      %p179 = scmp.ne.s32.totalorder %s164, %s178
      %p180 = scmp.eq.s32.totalorder %s28, 0
      %p181 = por %p179, %p180
      %s183 = sadd.s32 %s182, 1
      %p186 = scmp.eq.s32.totalorder %s22, 1
      %p187 = scmp.ne.s32.totalorder %s182, %s184
      %p188 = scmp.eq.s32.totalorder %s22, 0
      %p189 = por %p187, %p188
      %p190 = scmp.ne.s32.totalorder %s182, %s184
      %p191 = scmp.eq.s32.totalorder %s27, 1
      %p192 = por %p190, %p191
      %p193 = scmp.ne.s32.totalorder %s184, %s185
      %p194 = scmp.eq.s32.totalorder %s27, 0
      %p195 = por %p193, %p194
      %p196 = scmp.ne.s32.totalorder %s184, %s185
      %p197 = scmp.eq.s32.totalorder %s28, 1
      %p198 = por %p196, %p197
      %p200 = scmp.ne.s32.totalorder %s185, %s199
      %p201 = scmp.eq.s32.totalorder %s28, 0
      %p202 = por %p200, %p201
      %s204 = sadd.s32 %s203, 1
      %p207 = scmp.eq.s32.totalorder %s22, 1
      %p208 = scmp.ne.s32.totalorder %s203, %s205
      %p209 = scmp.eq.s32.totalorder %s22, 0
      %p210 = por %p208, %p209
      %p211 = scmp.ne.s32.totalorder %s203, %s205
      %p212 = scmp.eq.s32.totalorder %s27, 1
      %p213 = por %p211, %p212
      %p214 = scmp.ne.s32.totalorder %s205, %s206
      %p215 = scmp.eq.s32.totalorder %s27, 0
      %p216 = por %p214, %p215
      %p217 = scmp.ne.s32.totalorder %s205, %s206
      %p218 = scmp.eq.s32.totalorder %s28, 1
      %p219 = por %p217, %p218
      %p221 = scmp.ne.s32.totalorder %s206, %s220
      %p222 = scmp.eq.s32.totalorder %s28, 0
      %p223 = por %p221, %p222
      %s225 = sadd.s32 %s224, 1
      %p228 = scmp.eq.s32.totalorder %s22, 1
      %p229 = scmp.ne.s32.totalorder %s224, %s226
      %p230 = scmp.eq.s32.totalorder %s22, 0
      %p231 = por %p229, %p230
      %p232 = scmp.ne.s32.totalorder %s224, %s226
      %p233 = scmp.eq.s32.totalorder %s27, 1
      %p234 = por %p232, %p233
      %p235 = scmp.ne.s32.totalorder %s226, %s227
      %p236 = scmp.eq.s32.totalorder %s27, 0
      %p237 = por %p235, %p236
      %p238 = scmp.ne.s32.totalorder %s226, %s227
      %p239 = scmp.eq.s32.totalorder %s28, 1
      %p240 = por %p238, %p239
      %p242 = scmp.ne.s32.totalorder %s227, %s241
      %p243 = scmp.eq.s32.totalorder %s28, 0
      %p244 = por %p242, %p243
      %s246 = sadd.s32 %s245, 1
      %p249 = scmp.eq.s32.totalorder %s22, 1
      %p250 = scmp.ne.s32.totalorder %s245, %s247
      %p251 = scmp.eq.s32.totalorder %s22, 0
      %p252 = por %p250, %p251
      %p253 = scmp.ne.s32.totalorder %s245, %s247
      %p254 = scmp.eq.s32.totalorder %s27, 1
      %p255 = por %p253, %p254
      %p256 = scmp.ne.s32.totalorder %s247, %s248
      %p257 = scmp.eq.s32.totalorder %s27, 0
      %p258 = por %p256, %p257
      %p259 = scmp.ne.s32.totalorder %s247, %s248
      %p260 = scmp.eq.s32.totalorder %s28, 1
      %p261 = por %p259, %p260
      %p263 = scmp.ne.s32.totalorder %s248, %s262
      %p264 = scmp.eq.s32.totalorder %s28, 0
      %p265 = por %p263, %p264
      %s266 = ssub.s32 %s22, %s29
      %p267 = scmp.eq.s32.totalorder %s266, 0
      %s269 = sadd.s32 %s268, 1
      %s270 = scalar_select %p267, %s268, %s269
      %p273 = pneg %p267
      %p274 = scmp.eq.s32.totalorder %s22, 1
      %p275 = por %p273, %p274
      %p276 = scmp.ne.s32.totalorder %s268, %s271
      %p277 = scmp.eq.s32.totalorder %s22, 0
      %p278 = por %p276, %p277
      %p279 = scmp.ne.s32.totalorder %s268, %s271
      %p280 = scmp.eq.s32.totalorder %s27, 1
      %p281 = por %p279, %p280
      %p282 = scmp.ne.s32.totalorder %s271, %s272
      %p283 = scmp.eq.s32.totalorder %s27, 0
      %p284 = por %p282, %p283
      %p285 = scmp.ne.s32.totalorder %s271, %s272
      %p286 = scmp.eq.s32.totalorder %s28, 1
      %p287 = por %p285, %p286
      %p289 = scmp.ne.s32.totalorder %s272, %s288
      %p290 = scmp.eq.s32.totalorder %s28, 0
      %p291 = por %p289, %p290
      %p292 = scmp.le.s32.totalorder 1, %s22
      %p293 = scmp.lt.s32.totalorder %s22, 3
      %p294 = pnand %p292, %p293
      %p295 = pneg %p294
      // Predicated region
      $region9: #{tpu_custom_call.1} parent=5 // pred_check
        _
      $region10: #{tpu_custom_call.1} parent=5 // pred_check_branch
        %297 = sbr.rel (%p294) target = $region12
      $region11: #{tpu_custom_call.1} parent=5 // pred_region
        %s298 = ssub.s32 %s22, 1
        // Predicated region
        $region13: #{tpu_custom_call.1} parent=11 // pred_check
          %p299 = pneg %p69
        $region14: #{tpu_custom_call.1} parent=11 // pred_check_branch
          %301 = sbr.rel (%p299) target = $region16
        $region15: #{tpu_custom_call.1} parent=11 // pred_region
          _
        $region16: #{tpu_custom_call.1} parent=11 // pred_fallthru
          _
        // Predicated region
        $region17: #{tpu_custom_call.1} parent=11 // pred_check
          %p302 = pneg %p90
        $region18: #{tpu_custom_call.1} parent=11 // pred_check_branch
          %304 = sbr.rel (%p302) target = $region20
        $region19: #{tpu_custom_call.1} parent=11 // pred_region
          %s306 = ssub.s32 256, 256
          %307 = vsyncadd [#allocation3], %s306
          %s308 = sshll.u32 [#allocation2], 4
          %s309 = int_to_ptr.vmem [resolvable:$true] %s308
          %314 = dma.hbm_to_vmem [thread:$0]  %s2, 256, %s309, [#allocation3], 128, 128, 8
        $region20: #{tpu_custom_call.1} parent=11 // pred_fallthru
          _
        // Predicated region
        $region21: #{tpu_custom_call.1} parent=11 // pred_check
          %p315 = pneg %p111
        $region22: #{tpu_custom_call.1} parent=11 // pred_check_branch
          %317 = sbr.rel (%p315) target = $region24
        $region23: #{tpu_custom_call.1} parent=11 // pred_region
          _
        $region24: #{tpu_custom_call.1} parent=11 // pred_fallthru
          _
        // Predicated region
        $region25: #{tpu_custom_call.1} parent=11 // pred_check
          %p318 = pneg %p132
        $region26: #{tpu_custom_call.1} parent=11 // pred_check_branch
          %320 = sbr.rel (%p318) target = $region28
        $region27: #{tpu_custom_call.1} parent=11 // pred_region
          _
        $region28: #{tpu_custom_call.1} parent=11 // pred_fallthru
          _
        // Predicated region
        $region29: #{tpu_custom_call.1} parent=11 // pred_check
          %p321 = pneg %p153
        $region30: #{tpu_custom_call.1} parent=11 // pred_check_branch
          %323 = sbr.rel (%p321) target = $region32
        $region31: #{tpu_custom_call.1} parent=11 // pred_region
          _
        $region32: #{tpu_custom_call.1} parent=11 // pred_fallthru
          _
        // Predicated region
        $region33: #{tpu_custom_call.1} parent=11 // pred_check
          %p324 = pneg %p174
        $region34: #{tpu_custom_call.1} parent=11 // pred_check_branch
          %326 = sbr.rel (%p324) target = $region36
        $region35: #{tpu_custom_call.1} parent=11 // pred_region
          %s328 = ssub.s32 128, 128
          %329 = vsyncadd [#allocation6], %s328
          %s331 = sshll.u32 [#allocation5], 4
          %s332 = int_to_ptr.vmem [resolvable:$true] %s331
          %334 = dma.hbm_to_vmem [thread:$0]  %s6, 128, %s332, [#allocation6]
        $region36: #{tpu_custom_call.1} parent=11 // pred_fallthru
          _
        // Predicated region
        $region37: #{tpu_custom_call.1} parent=11 // pred_check
          %p335 = pneg %p195
        $region38: #{tpu_custom_call.1} parent=11 // pred_check_branch
          %337 = sbr.rel (%p335) target = $region40
        $region39: #{tpu_custom_call.1} parent=11 // pred_region
          _
        $region40: #{tpu_custom_call.1} parent=11 // pred_fallthru
          _
        // Predicated region
        $region41: #{tpu_custom_call.1} parent=11 // pred_check
          %p338 = pneg %p216
        $region42: #{tpu_custom_call.1} parent=11 // pred_check_branch
          %340 = sbr.rel (%p338) target = $region44
        $region43: #{tpu_custom_call.1} parent=11 // pred_region
          _
        $region44: #{tpu_custom_call.1} parent=11 // pred_fallthru
          _
        // Predicated region
        $region45: #{tpu_custom_call.1} parent=11 // pred_check
          %p341 = pneg %p237
        $region46: #{tpu_custom_call.1} parent=11 // pred_check_branch
          %343 = sbr.rel (%p341) target = $region48
        $region47: #{tpu_custom_call.1} parent=11 // pred_region
          _
        $region48: #{tpu_custom_call.1} parent=11 // pred_fallthru
          _
        // Predicated region
        $region49: #{tpu_custom_call.1} parent=11 // pred_check
          %p344 = pneg %p258
        $region50: #{tpu_custom_call.1} parent=11 // pred_check_branch
          %346 = sbr.rel (%p344) target = $region52
        $region51: #{tpu_custom_call.1} parent=11 // pred_region
          _
        $region52: #{tpu_custom_call.1} parent=11 // pred_fallthru
          _
      $region12: #{tpu_custom_call.1} parent=5 // pred_fallthru
        _
      %p347 = scmp.lt.s32.totalorder %s22, 2
      // Predicated region
      $region53: #{tpu_custom_call.1} parent=5 // pred_check
        %p348 = pneg %p347
      $region54: #{tpu_custom_call.1} parent=5 // pred_check_branch
        %350 = sbr.rel (%p348) target = $region56
      $region55: #{tpu_custom_call.1} parent=5 // pred_region
        // Predicated region
        $region57: #{tpu_custom_call.1} parent=55 // pred_check
          %p351 = pneg %p42
        $region58: #{tpu_custom_call.1} parent=55 // pred_check_branch
          %353 = sbr.rel (%p351) target = $region60
        $region59: #{tpu_custom_call.1} parent=55 // pred_region
          %p354 = scmp.lt.s32.totalorder %s22, 1
          %s355 = scalar_select %p354, %s22, 1
          %s356 = smul.addr %s355, 2
          %s357 = smul.addr %s356, 8
          %s358 = scalar_lea.vmem %s0, %s357
        $region60: #{tpu_custom_call.1} parent=55 // pred_fallthru
          _
      $region56: #{tpu_custom_call.1} parent=5 // pred_fallthru
        _
      %p359 = scmp.le.s32.totalorder 1, %s22
      %p360 = scmp.lt.s32.totalorder %s22, 3
      %p361 = pnand %p359, %p360
      %p362 = pneg %p361
      // Predicated region
      $region61: #{tpu_custom_call.1} parent=5 // pred_check
        _
      $region62: #{tpu_custom_call.1} parent=5 // pred_check_branch
        %364 = sbr.rel (%p361) target = $region64
      $region63: #{tpu_custom_call.1} parent=5 // pred_region
        %s365 = ssub.s32 %s22, 1
        // Predicated region
        $region65: #{tpu_custom_call.1} parent=63 // pred_check
          %p366 = pneg %p90
        $region66: #{tpu_custom_call.1} parent=63 // pred_check_branch
          %368 = sbr.rel (%p366) target = $region68
        $region67: #{tpu_custom_call.1} parent=63 // pred_region
          %369 = dma.done [#allocation3], 256
        $region68: #{tpu_custom_call.1} parent=63 // pred_fallthru
          _
        // Predicated region
        $region69: #{tpu_custom_call.1} parent=63 // pred_check
          %p370 = pneg %p174
        $region70: #{tpu_custom_call.1} parent=63 // pred_check_branch
          %372 = sbr.rel (%p370) target = $region72
        $region71: #{tpu_custom_call.1} parent=63 // pred_region
          %373 = dma.done [#allocation6], 128
        $region72: #{tpu_custom_call.1} parent=63 // pred_fallthru
          _
        %p374 = scmp.lt.s32.totalorder %s27, 1
        %s375 = scalar_select %p374, %s27, 1
        %s376 = smul.addr %s375, 2
        %s377 = smul.addr %s376, 8
        %s378 = scalar_lea.vmem %s0, %s377
        %p379 = pneg %p48
        %p380 = pneg %p45
        %p381 = pneg %p69
        %p382 = pneg %p66
        %p383 = pneg %p90
        %p384 = pneg %p87
        %p385 = pneg %p111
        %p386 = pneg %p108
        %p387 = pneg %p132
        %p388 = pneg %p129
        %p389 = pneg %p153
        %p390 = pneg %p150
        %p391 = pneg %p174
        %p392 = pneg %p171
        %p393 = pneg %p195
        %p394 = pneg %p192
        %p395 = pneg %p216
        %p396 = pneg %p213
        %p397 = pneg %p237
        %p398 = pneg %p234
        %p399 = pneg %p258
        %p400 = pneg %p255
        %p401 = pneg %p284
        %p402 = pneg %p281
        %s403 = sand.u32 %s271, 1
        %s404 = scalar_lea.sflag [#allocation4], %s403
        %s405 = sand.u32 %s271, 1
        %s406 = smul.addr %s405, 16
        %s407 = scalar_lea.vmem [#allocation7], %s406
        %p408 = scmp.lt.s32.totalorder %s27, 1
        %s409 = scalar_select %p408, %s27, 1
        %s410 = smul.addr %s409, 2
        %s411 = smul.addr %s410, 8
        %s412 = scalar_lea.vmem %s0, %s411
        %v413 = vld [vmem:[#allocation5] sm:$0x7f]
        %v414 = vld [vmem:[%s412] sm:$0xff]
        %v415 = vld [vmem:[%s412 + $0x8] sm:$0xff]
        %v416 = vld [vmem:[%s1] sm:$0xff]
        %v417 = vld [vmem:[%s1 + $0x8] sm:$0xff]
        %v418 = vld [vmem:[%s1 + $0x10] sm:$0xff]
        %v419 = vld [vmem:[%s1 + $0x18] sm:$0xff]
        %v420 = vld [vmem:[%s1 + $0x20] sm:$0xff]
        %v421 = vld [vmem:[%s1 + $0x28] sm:$0xff]
        %v422 = vld [vmem:[#allocation2] sm:$0xff]
        %v423 = vld [vmem:[#allocation2 + $0x8] sm:$0xff]
        %vm424 = vcmask 392192
        %v426 = vsel %vm424, %v414, 0
        %v429 = vsel %vm424, %v415, 0
        %431 = vmatprep.subr.mxu0 0.0
        %432 = vmatpush1.msra.mxu0 %v416
        %433 = vmatprep.subr.mxu0 0.0
        %434 = vmatpush1.msra.mxu0 %v417
        %435 = vmatprep.subr.mxu0 0.0
        %436 = vmatpush1.msra.mxu0 %v418
        %437 = vmatprep.subr.mxu0 0.0
        %438 = vmatpush1.msra.mxu0 %v419
        %439 = vmatprep.subr.mxu0 0.0
        %440 = vmatpush1.msra.mxu0 %v420
        %441 = vmatprep.subr.mxu0 0.0
        %442 = vmatpush1.msra.mxu0 %v421
        %443 = vmatprep.subr.mxu0 0.0
        %444 = vmatpush1.msra.mxu0 0.0
        %445 = vmatprep.subr.mxu0 0.0
        %446 = vmatpush1.msra.mxu0 0.0
        %447 = vmatprep.subr.mxu0 0.0
        %448 = vmatpush1.msra.mxu0 0.0
        %449 = vmatprep.subr.mxu0 0.0
        %450 = vmatpush1.msra.mxu0 0.0
        %451 = vmatprep.subr.mxu0 0.0
        %452 = vmatpush1.msra.mxu0 0.0
        %453 = vmatprep.subr.mxu0 0.0
        %454 = vmatpush1.msra.mxu0 0.0
        %455 = vmatprep.subr.mxu0 0.0
        %456 = vmatpush1.msra.mxu0 0.0
        %457 = vmatprep.subr.mxu0 0.0
        %458 = vmatpush1.msra.mxu0 0.0
        %459 = vmatprep.subr.mxu0 0.0
        %460 = vmatpush1.msra.mxu0 0.0
        %461 = vmatprep.subr.mxu0 0.0
        %462 = vmatpush1.msra.mxu0 0.0
        %463 = vmatprep.subr.mxu0 0.0
        %464 = vmatpush1.msra.mxu0 0.0
        %465 = vmatprep.subr.mxu0 0.0
        %466 = vmatpush1.msra.mxu0 0.0
        %467 = vmatprep.subr.mxu0 0.0
        %468 = vmatpush1.msra.mxu0 0.0
        %469 = vmatprep.subr.mxu0 0.0
        %470 = vmatpush1.msra.mxu0 0.0
        %471 = vmatprep.subr.mxu0 0.0
        %472 = vmatpush1.msra.mxu0 0.0
        %473 = vmatprep.subr.mxu0 0.0
        %474 = vmatpush1.msra.mxu0 0.0
        %475 = vmatprep.subr.mxu0 0.0
        %476 = vmatpush1.msra.mxu0 0.0
        %477 = vmatprep.subr.mxu0 0.0
        %478 = vmatpush1.msra.mxu0 0.0
        %479 = vmatprep.subr.mxu0 0.0
        %480 = vmatpush1.msra.mxu0 0.0
        %481 = vmatprep.subr.mxu0 0.0
        %482 = vmatpush1.msra.mxu0 0.0
        %483 = vmatprep.subr.mxu0 0.0
        %484 = vmatpush1.msra.mxu0 0.0
        %485 = vmatprep.subr.mxu0 0.0
        %486 = vmatpush1.msra.mxu0 0.0
        %487 = vmatprep.subr.mxu0 0.0
        %488 = vmatpush1.msra.mxu0 0.0
        %489 = vmatprep.subr.mxu0 0.0
        %490 = vmatpush1.msra.mxu0 0.0
        %491 = vmatprep.subr.mxu0 0.0
        %492 = vmatpush1.msra.mxu0 0.0
        %493 = vmatprep.subr.mxu0 0.0
        %494 = vmatpush1.msra.mxu0 0.0
        %495 = vmatprep.mubr.f32.mxu0 0.0
        %496 = vmatmul.mubr.f32.gmra.mrb[0].mxu0 %v426
        %v497 = vpop.f32.mrb[0].mxu0
        %v498 = vadd.f32 %v422, %v497
        %v499 = vpop.f32.mrb[0].mxu0
        %500 = vmatprep.mubr.f32.mxu0 0.0
        %501 = vmatmul.mubr.f32.gmra.mrb[0].mxu0 %v429
        %v502 = vpop.f32.mrb[0].mxu0
        %v503 = vadd.f32 %v423, %v502
        %v504 = vpop.f32.mrb[0].mxu0
        %505 = vdwg.mxu0
        %vm506 = vcmask 261120
        %v507 = vsel %vm506, %v498, 0.0
        %508 = vadd.xlane.f32.xlu0 %v507
        %v509 = vpop.xlane.xlu0 %508
        %v510 = vsel %vm506, %v503, 0.0
        %511 = vadd.xlane.f32.xlu0 %v510
        %v512 = vpop.xlane.xlu0 %511
        %v513 = vrcp.pop 32.0
        %v514 = vmul.f32 %v509, %v513
        %v515 = vmul.f32 %v512, %v513
        %v516 = vsub.f32 %v498, %v514
        %v517 = vsub.f32 %v503, %v515
        %v518 = vmul.f32 %v516, %v516
        %v519 = vmul.f32 %v517, %v517
        %v520 = vsel %vm506, %v518, 0.0
        %521 = vadd.xlane.f32.xlu0 %v520
        %v522 = vpop.xlane.xlu0 %521
        %v523 = vsel %vm506, %v519, 0.0
        %524 = vadd.xlane.f32.xlu0 %v523
        %v525 = vpop.xlane.xlu0 %524
        %v526 = vmul.f32 %v522, %v513
        %v527 = vmul.f32 %v525, %v513
        %v528 = vadd.f32 %v526, 1e-06
        %v529 = vadd.f32 %v527, 1e-06
        %v530 = vrsqrt.pop %v528
        %v531 = vrsqrt.pop %v529
        %v532 = vmul.f32 %v516, %v530
        %v533 = vmul.f32 %v517, %v531
        %v534 = vlaneseq
        %v535 = vshrl.u32 %v534, 7
        %v536 = vsub.s32 1, %v535
        %v537 = vrot.slane %v413, %v536
        %v538 = vmul.f32 %v532, %v537
        %v539 = vmul.f32 %v533, %v537
        %v540 = vlaneseq
        %v541 = vshrl.u32 %v540, 7
        %v542 = vsub.s32 2, %v541
        %v543 = vrot.slane %v413, %v542
        %v544 = vadd.f32 %v538, %v543
        %v545 = vadd.f32 %v539, %v543
        %v546 = vld [vmem:[%s3] sm:$0xff]
        %v547 = vld [vmem:[%s3 + $0x8] sm:$0xff]
        %v548 = vld [vmem:[%s3 + $0x10] sm:$0xff]
        %v549 = vld [vmem:[%s3 + $0x18] sm:$0xff]
        %v550 = vld [vmem:[%s4] sm:$0x1]
        %v551 = vld [vmem:[%s5] sm:$0xff]
        %v552 = vld [vmem:[%s5 + $0x8] sm:$0xff]
        %v553 = vld [vmem:[%s5 + $0x10] sm:$0xff]
        %v554 = vld [vmem:[%s5 + $0x18] sm:$0xff]
        %v556 = vlaneseq
        %v557 = vshrl.u32 %v556, 7
        %v558 = vsub.s32 0, %v557
        %v559 = vrot.slane %v550, %v558
        %v562 = vsel %vm506, %v544, 0
        %v565 = vsel %vm506, %v545, 0
        %567 = vmatprep.subr.mxu0 0.0
        %568 = vmatpush1.msra.mxu0 %v546
        %569 = vmatprep.subr.mxu0 0.0
        %570 = vmatpush1.msra.mxu0 %v547
        %571 = vmatprep.subr.mxu0 0.0
        %572 = vmatpush1.msra.mxu0 %v548
        %573 = vmatprep.subr.mxu0 0.0
        %574 = vmatpush1.msra.mxu0 %v549
        %575 = vmatprep.subr.mxu0 0.0
        %576 = vmatpush1.msra.mxu0 0.0
        %577 = vmatprep.subr.mxu0 0.0
        %578 = vmatpush1.msra.mxu0 0.0
        %579 = vmatprep.subr.mxu0 0.0
        %580 = vmatpush1.msra.mxu0 0.0
        %581 = vmatprep.subr.mxu0 0.0
        %582 = vmatpush1.msra.mxu0 0.0
        %583 = vmatprep.subr.mxu0 0.0
        %584 = vmatpush1.msra.mxu0 0.0
        %585 = vmatprep.subr.mxu0 0.0
        %586 = vmatpush1.msra.mxu0 0.0
        %587 = vmatprep.subr.mxu0 0.0
        %588 = vmatpush1.msra.mxu0 0.0
        %589 = vmatprep.subr.mxu0 0.0
        %590 = vmatpush1.msra.mxu0 0.0
        %591 = vmatprep.subr.mxu0 0.0
        %592 = vmatpush1.msra.mxu0 0.0
        %593 = vmatprep.subr.mxu0 0.0
        %594 = vmatpush1.msra.mxu0 0.0
        %595 = vmatprep.subr.mxu0 0.0
        %596 = vmatpush1.msra.mxu0 0.0
        %597 = vmatprep.subr.mxu0 0.0
        %598 = vmatpush1.msra.mxu0 0.0
        %599 = vmatprep.subr.mxu0 0.0
        %600 = vmatpush1.msra.mxu0 0.0
        %601 = vmatprep.subr.mxu0 0.0
        %602 = vmatpush1.msra.mxu0 0.0
        %603 = vmatprep.subr.mxu0 0.0
        %604 = vmatpush1.msra.mxu0 0.0
        %605 = vmatprep.subr.mxu0 0.0
        %606 = vmatpush1.msra.mxu0 0.0
        %607 = vmatprep.subr.mxu0 0.0
        %608 = vmatpush1.msra.mxu0 0.0
        %609 = vmatprep.subr.mxu0 0.0
        %610 = vmatpush1.msra.mxu0 0.0
        %611 = vmatprep.subr.mxu0 0.0
        %612 = vmatpush1.msra.mxu0 0.0
        %613 = vmatprep.subr.mxu0 0.0
        %614 = vmatpush1.msra.mxu0 0.0
        %615 = vmatprep.subr.mxu0 0.0
        %616 = vmatpush1.msra.mxu0 0.0
        %617 = vmatprep.subr.mxu0 0.0
        %618 = vmatpush1.msra.mxu0 0.0
        %619 = vmatprep.subr.mxu0 0.0
        %620 = vmatpush1.msra.mxu0 0.0
        %621 = vmatprep.subr.mxu0 0.0
        %622 = vmatpush1.msra.mxu0 0.0
        %623 = vmatprep.subr.mxu0 0.0
        %624 = vmatpush1.msra.mxu0 0.0
        %625 = vmatprep.subr.mxu0 0.0
        %626 = vmatpush1.msra.mxu0 0.0
        %627 = vmatprep.subr.mxu0 0.0
        %628 = vmatpush1.msra.mxu0 0.0
        %629 = vmatprep.subr.mxu0 0.0
        %630 = vmatpush1.msra.mxu0 0.0
        %631 = vmatprep.mubr.f32.mxu0 0.0
        %632 = vmatmul.mubr.f32.gmra.mrb[0].mxu0 %v562
        %v633 = vpop.f32.mrb[0].mxu0
        %v634 = vadd.f32 %v559, %v633
        %v635 = vpop.f32.mrb[0].mxu0
        %636 = vmatprep.mubr.f32.mxu0 0.0
        %637 = vmatmul.mubr.f32.gmra.mrb[0].mxu0 %v565
        %v638 = vpop.f32.mrb[0].mxu0
        %v639 = vadd.f32 %v559, %v638
        %v640 = vpop.f32.mrb[0].mxu0
        %641 = vdwg.mxu0
        %644 = vrot.lane.b32.xlu0 %v634, 96
        %v645 = vpop.permute.xlu0 %644
        %646 = vrot.lane.b32.xlu0 %v639, 96
        %v647 = vpop.permute.xlu0 %646
        %vm648 = vcmask 130048
        %v649 = vsel %vm648, %v634, 0
        %v651 = vsel %vm648, %v639, 0
        %v653 = vsel %vm648, %v645, 0
        %v655 = vsel %vm648, %v647, 0
        %657 = vmatprep.subr.mxu0 0.0
        %658 = vmatpush1.xpose.msra.mxu0 %v653
        %659 = vmatprep.subr.mxu0 0.0
        %660 = vmatpush1.xpose.msra.mxu0 %v655
        %661 = vmatprep.subr.mxu0 0.0
        %662 = vmatpush1.xpose.msra.mxu0 0.0
        %663 = vmatprep.subr.mxu0 0.0
        %664 = vmatpush1.xpose.msra.mxu0 0.0
        %665 = vmatprep.subr.mxu0 0.0
        %666 = vmatpush1.xpose.msra.mxu0 0.0
        %667 = vmatprep.subr.mxu0 0.0
        %668 = vmatpush1.xpose.msra.mxu0 0.0
        %669 = vmatprep.subr.mxu0 0.0
        %670 = vmatpush1.xpose.msra.mxu0 0.0
        %671 = vmatprep.subr.mxu0 0.0
        %672 = vmatpush1.xpose.msra.mxu0 0.0
        %673 = vmatprep.subr.mxu0 0.0
        %674 = vmatpush1.xpose.msra.mxu0 0.0
        %675 = vmatprep.subr.mxu0 0.0
        %676 = vmatpush1.xpose.msra.mxu0 0.0
        %677 = vmatprep.subr.mxu0 0.0
        %678 = vmatpush1.xpose.msra.mxu0 0.0
        %679 = vmatprep.subr.mxu0 0.0
        %680 = vmatpush1.xpose.msra.mxu0 0.0
        %681 = vmatprep.subr.mxu0 0.0
        %682 = vmatpush1.xpose.msra.mxu0 0.0
        %683 = vmatprep.subr.mxu0 0.0
        %684 = vmatpush1.xpose.msra.mxu0 0.0
        %685 = vmatprep.subr.mxu0 0.0
        %686 = vmatpush1.xpose.msra.mxu0 0.0
        %687 = vmatprep.subr.mxu0 0.0
        %688 = vmatpush1.xpose.msra.mxu0 0.0
        %689 = vmatprep.subr.mxu0 0.0
        %690 = vmatpush1.xpose.msra.mxu0 0.0
        %691 = vmatprep.subr.mxu0 0.0
        %692 = vmatpush1.xpose.msra.mxu0 0.0
        %693 = vmatprep.subr.mxu0 0.0
        %694 = vmatpush1.xpose.msra.mxu0 0.0
        %695 = vmatprep.subr.mxu0 0.0
        %696 = vmatpush1.xpose.msra.mxu0 0.0
        %697 = vmatprep.subr.mxu0 0.0
        %698 = vmatpush1.xpose.msra.mxu0 0.0
        %699 = vmatprep.subr.mxu0 0.0
        %700 = vmatpush1.xpose.msra.mxu0 0.0
        %701 = vmatprep.subr.mxu0 0.0
        %702 = vmatpush1.xpose.msra.mxu0 0.0
        %703 = vmatprep.subr.mxu0 0.0
        %704 = vmatpush1.xpose.msra.mxu0 0.0
        %705 = vmatprep.subr.mxu0 0.0
        %706 = vmatpush1.xpose.msra.mxu0 0.0
        %707 = vmatprep.subr.mxu0 0.0
        %708 = vmatpush1.xpose.msra.mxu0 0.0
        %709 = vmatprep.subr.mxu0 0.0
        %710 = vmatpush1.xpose.msra.mxu0 0.0
        %711 = vmatprep.subr.mxu0 0.0
        %712 = vmatpush1.xpose.msra.mxu0 0.0
        %713 = vmatprep.subr.mxu0 0.0
        %714 = vmatpush1.xpose.msra.mxu0 0.0
        %715 = vmatprep.subr.mxu0 0.0
        %716 = vmatpush1.xpose.msra.mxu0 0.0
        %717 = vmatprep.subr.mxu0 0.0
        %718 = vmatpush1.xpose.msra.mxu0 0.0
        %719 = vmatprep.subr.mxu0 0.0
        %720 = vmatpush1.xpose.msra.mxu0 0.0
        %721 = vmatprep.mubr.f32.mxu0 0.0
        %722 = vmatmul.mubr.f32.gmra.mrb[0].mxu0 %v649
        %v723 = vpop.f32.mrb[0].mxu0
        %v724 = vadd.f32 0.0, %v723
        %v725 = vpop.f32.mrb[0].mxu0
        %726 = vmatprep.mubr.f32.mxu0 0.0
        %727 = vmatmul.mubr.f32.gmra.mrb[0].mxu0 %v651
        %v728 = vpop.f32.mrb[0].mxu0
        %v729 = vadd.f32 0.0, %v728
        %v730 = vpop.f32.mrb[0].mxu0
        %731 = vdwg.mxu0
        %v732 = vmul.f32 %v724, 0.25
        %v733 = vmul.f32 %v729, 0.25
        %v734 = vsel %vm648, %v732, -inf
        %735 = vmax.xlane.f32.xlu0 %v734
        %v736 = vpop.xlane.xlu0 %735
        %v737 = vsel %vm648, %v733, -inf
        %738 = vmax.xlane.f32.xlu0 %v737
        %v739 = vpop.xlane.xlu0 %738
        %v740 = vsub.f32 %v732, %v736
        %v741 = vsub.f32 %v733, %v739
        %v742 = vmul.f32 %v740, 1.442695
        %v743 = vpow.pop %v742
        %v744 = vmul.f32 %v741, 1.442695
        %v745 = vpow.pop %v744
        %v746 = vsel %vm648, %v743, 0.0
        %747 = vadd.xlane.f32.xlu0 %v746
        %v748 = vpop.xlane.xlu0 %747
        %v749 = vsel %vm648, %v745, 0.0
        %750 = vadd.xlane.f32.xlu0 %v749
        %v751 = vpop.xlane.xlu0 %750
        %752 = vrot.lane.b32.xlu0 %v634, 64
        %v753 = vpop.permute.xlu0 %752
        %754 = vrot.lane.b32.xlu0 %v639, 64
        %v755 = vpop.permute.xlu0 %754
        %v759 = vsel %vm648, %v743, 0
        %v762 = vsel %vm648, %v745, 0
        %764 = vmatprep.subr.mxu0 0.0
        %765 = vmatpush1.msra.mxu0 %v753
        %766 = vmatprep.subr.mxu0 0.0
        %767 = vmatpush1.msra.mxu0 %v755
        %768 = vmatprep.subr.mxu0 0.0
        %769 = vmatpush1.msra.mxu0 0.0
        %770 = vmatprep.subr.mxu0 0.0
        %771 = vmatpush1.msra.mxu0 0.0
        %772 = vmatprep.subr.mxu0 0.0
        %773 = vmatpush1.msra.mxu0 0.0
        %774 = vmatprep.subr.mxu0 0.0
        %775 = vmatpush1.msra.mxu0 0.0
        %776 = vmatprep.subr.mxu0 0.0
        %777 = vmatpush1.msra.mxu0 0.0
        %778 = vmatprep.subr.mxu0 0.0
        %779 = vmatpush1.msra.mxu0 0.0
        %780 = vmatprep.subr.mxu0 0.0
        %781 = vmatpush1.msra.mxu0 0.0
        %782 = vmatprep.subr.mxu0 0.0
        %783 = vmatpush1.msra.mxu0 0.0
        %784 = vmatprep.subr.mxu0 0.0
        %785 = vmatpush1.msra.mxu0 0.0
        %786 = vmatprep.subr.mxu0 0.0
        %787 = vmatpush1.msra.mxu0 0.0
        %788 = vmatprep.subr.mxu0 0.0
        %789 = vmatpush1.msra.mxu0 0.0
        %790 = vmatprep.subr.mxu0 0.0
        %791 = vmatpush1.msra.mxu0 0.0
        %792 = vmatprep.subr.mxu0 0.0
        %793 = vmatpush1.msra.mxu0 0.0
        %794 = vmatprep.subr.mxu0 0.0
        %795 = vmatpush1.msra.mxu0 0.0
        %796 = vmatprep.subr.mxu0 0.0
        %797 = vmatpush1.msra.mxu0 0.0
        %798 = vmatprep.subr.mxu0 0.0
        %799 = vmatpush1.msra.mxu0 0.0
        %800 = vmatprep.subr.mxu0 0.0
        %801 = vmatpush1.msra.mxu0 0.0
        %802 = vmatprep.subr.mxu0 0.0
        %803 = vmatpush1.msra.mxu0 0.0
        %804 = vmatprep.subr.mxu0 0.0
        %805 = vmatpush1.msra.mxu0 0.0
        %806 = vmatprep.subr.mxu0 0.0
        %807 = vmatpush1.msra.mxu0 0.0
        %808 = vmatprep.subr.mxu0 0.0
        %809 = vmatpush1.msra.mxu0 0.0
        %810 = vmatprep.subr.mxu0 0.0
        %811 = vmatpush1.msra.mxu0 0.0
        %812 = vmatprep.subr.mxu0 0.0
        %813 = vmatpush1.msra.mxu0 0.0
        %814 = vmatprep.subr.mxu0 0.0
        %815 = vmatpush1.msra.mxu0 0.0
        %816 = vmatprep.subr.mxu0 0.0
        %817 = vmatpush1.msra.mxu0 0.0
        %818 = vmatprep.subr.mxu0 0.0
        %819 = vmatpush1.msra.mxu0 0.0
        %820 = vmatprep.subr.mxu0 0.0
        %821 = vmatpush1.msra.mxu0 0.0
        %822 = vmatprep.subr.mxu0 0.0
        %823 = vmatpush1.msra.mxu0 0.0
        %824 = vmatprep.subr.mxu0 0.0
        %825 = vmatpush1.msra.mxu0 0.0
        %826 = vmatprep.subr.mxu0 0.0
        %827 = vmatpush1.msra.mxu0 0.0
        %828 = vmatprep.mubr.f32.mxu0 0.0
        %829 = vmatmul.mubr.f32.gmra.mrb[0].mxu0 %v759
        %v830 = vpop.f32.mrb[0].mxu0
        %v831 = vadd.f32 0.0, %v830
        %v832 = vpop.f32.mrb[0].mxu0
        %833 = vmatprep.mubr.f32.mxu0 0.0
        %834 = vmatmul.mubr.f32.gmra.mrb[0].mxu0 %v762
        %v835 = vpop.f32.mrb[0].mxu0
        %v836 = vadd.f32 0.0, %v835
        %v837 = vpop.f32.mrb[0].mxu0
        %838 = vdwg.mxu0
        %v839 = vrcp.pop %v748
        %v840 = vrcp.pop %v751
        %v841 = vmul.f32 %v831, %v839
        %v842 = vmul.f32 %v836, %v840
        %v844 = vsel %vm648, %v841, 0
        %v847 = vsel %vm648, %v842, 0
        %849 = vmatprep.subr.mxu0 0.0
        %850 = vmatpush1.msra.mxu0 %v551
        %851 = vmatprep.subr.mxu0 0.0
        %852 = vmatpush1.msra.mxu0 %v552
        %853 = vmatprep.subr.mxu0 0.0
        %854 = vmatpush1.msra.mxu0 0.0
        %855 = vmatprep.subr.mxu0 0.0
        %856 = vmatpush1.msra.mxu0 0.0
        %857 = vmatprep.subr.mxu0 0.0
        %858 = vmatpush1.msra.mxu0 0.0
        %859 = vmatprep.subr.mxu0 0.0
        %860 = vmatpush1.msra.mxu0 0.0
        %861 = vmatprep.subr.mxu0 0.0
        %862 = vmatpush1.msra.mxu0 0.0
        %863 = vmatprep.subr.mxu0 0.0
        %864 = vmatpush1.msra.mxu0 0.0
        %865 = vmatprep.subr.mxu0 0.0
        %866 = vmatpush1.msra.mxu0 0.0
        %867 = vmatprep.subr.mxu0 0.0
        %868 = vmatpush1.msra.mxu0 0.0
        %869 = vmatprep.subr.mxu0 0.0
        %870 = vmatpush1.msra.mxu0 0.0
        %871 = vmatprep.subr.mxu0 0.0
        %872 = vmatpush1.msra.mxu0 0.0
        %873 = vmatprep.subr.mxu0 0.0
        %874 = vmatpush1.msra.mxu0 0.0
        %875 = vmatprep.subr.mxu0 0.0
        %876 = vmatpush1.msra.mxu0 0.0
        %877 = vmatprep.subr.mxu0 0.0
        %878 = vmatpush1.msra.mxu0 0.0
        %879 = vmatprep.subr.mxu0 0.0
        %880 = vmatpush1.msra.mxu0 0.0
        %881 = vmatprep.subr.mxu0 0.0
        %882 = vmatpush1.msra.mxu0 0.0
        %883 = vmatprep.subr.mxu0 0.0
        %884 = vmatpush1.msra.mxu0 0.0
        %885 = vmatprep.subr.mxu0 0.0
        %886 = vmatpush1.msra.mxu0 0.0
        %887 = vmatprep.subr.mxu0 0.0
        %888 = vmatpush1.msra.mxu0 0.0
        %889 = vmatprep.subr.mxu0 0.0
        %890 = vmatpush1.msra.mxu0 0.0
        %891 = vmatprep.subr.mxu0 0.0
        %892 = vmatpush1.msra.mxu0 0.0
        %893 = vmatprep.subr.mxu0 0.0
        %894 = vmatpush1.msra.mxu0 0.0
        %895 = vmatprep.subr.mxu0 0.0
        %896 = vmatpush1.msra.mxu0 0.0
        %897 = vmatprep.subr.mxu0 0.0
        %898 = vmatpush1.msra.mxu0 0.0
        %899 = vmatprep.subr.mxu0 0.0
        %900 = vmatpush1.msra.mxu0 0.0
        %901 = vmatprep.subr.mxu0 0.0
        %902 = vmatpush1.msra.mxu0 0.0
        %903 = vmatprep.subr.mxu0 0.0
        %904 = vmatpush1.msra.mxu0 0.0
        %905 = vmatprep.subr.mxu0 0.0
        %906 = vmatpush1.msra.mxu0 0.0
        %907 = vmatprep.subr.mxu0 0.0
        %908 = vmatpush1.msra.mxu0 0.0
        %909 = vmatprep.subr.mxu0 0.0
        %910 = vmatpush1.msra.mxu0 0.0
        %911 = vmatprep.subr.mxu0 0.0
        %912 = vmatpush1.msra.mxu0 0.0
        %913 = vmatprep.mubr.f32.mxu0 0.0
        %914 = vmatmul.mubr.f32.gmra.mrb[0].mxu0 %v844
        %v915 = vpop.f32.mrb[0].mxu0
        %v916 = vadd.f32 0.0, %v915
        %v917 = vpop.f32.mrb[0].mxu0
        %918 = vmatprep.mubr.f32.mxu0 0.0
        %919 = vmatmul.mubr.f32.gmra.mrb[0].mxu0 %v847
        %v920 = vpop.f32.mrb[0].mxu0
        %v921 = vadd.f32 0.0, %v920
        %v922 = vpop.f32.mrb[0].mxu0
        %923 = vdwg.mxu0
        %v924 = vlaneseq
        %v925 = vshrl.u32 %v924, 7
        %v926 = vsub.s32 0, %v925
        %v927 = vrot.slane %v413, %v926
        %v928 = vadd.f32 %v927, %v916
        %v929 = vadd.f32 %v927, %v921
        %930 = vrot.lane.b32.xlu0 %v634, 112
        %v931 = vpop.permute.xlu0 %930
        %932 = vrot.lane.b32.xlu0 %v639, 112
        %v933 = vpop.permute.xlu0 %932
        %934 = vrot.lane.b32.xlu0 %v634, 80
        %v935 = vpop.permute.xlu0 %934
        %936 = vrot.lane.b32.xlu0 %v639, 80
        %v937 = vpop.permute.xlu0 %936
        %v938 = vsel %vm648, %v931, 0
        %v940 = vsel %vm648, %v933, 0
        %v942 = vsel %vm648, %v935, 0
        %v944 = vsel %vm648, %v937, 0
        %946 = vmatprep.subr.mxu0 0.0
        %947 = vmatpush1.xpose.msra.mxu0 %v942
        %948 = vmatprep.subr.mxu0 0.0
        %949 = vmatpush1.xpose.msra.mxu0 %v944
        %950 = vmatprep.subr.mxu0 0.0
        %951 = vmatpush1.xpose.msra.mxu0 0.0
        %952 = vmatprep.subr.mxu0 0.0
        %953 = vmatpush1.xpose.msra.mxu0 0.0
        %954 = vmatprep.subr.mxu0 0.0
        %955 = vmatpush1.xpose.msra.mxu0 0.0
        %956 = vmatprep.subr.mxu0 0.0
        %957 = vmatpush1.xpose.msra.mxu0 0.0
        %958 = vmatprep.subr.mxu0 0.0
        %959 = vmatpush1.xpose.msra.mxu0 0.0
        %960 = vmatprep.subr.mxu0 0.0
        %961 = vmatpush1.xpose.msra.mxu0 0.0
        %962 = vmatprep.subr.mxu0 0.0
        %963 = vmatpush1.xpose.msra.mxu0 0.0
        %964 = vmatprep.subr.mxu0 0.0
        %965 = vmatpush1.xpose.msra.mxu0 0.0
        %966 = vmatprep.subr.mxu0 0.0
        %967 = vmatpush1.xpose.msra.mxu0 0.0
        %968 = vmatprep.subr.mxu0 0.0
        %969 = vmatpush1.xpose.msra.mxu0 0.0
        %970 = vmatprep.subr.mxu0 0.0
        %971 = vmatpush1.xpose.msra.mxu0 0.0
        %972 = vmatprep.subr.mxu0 0.0
        %973 = vmatpush1.xpose.msra.mxu0 0.0
        %974 = vmatprep.subr.mxu0 0.0
        %975 = vmatpush1.xpose.msra.mxu0 0.0
        %976 = vmatprep.subr.mxu0 0.0
        %977 = vmatpush1.xpose.msra.mxu0 0.0
        %978 = vmatprep.subr.mxu0 0.0
        %979 = vmatpush1.xpose.msra.mxu0 0.0
        %980 = vmatprep.subr.mxu0 0.0
        %981 = vmatpush1.xpose.msra.mxu0 0.0
        %982 = vmatprep.subr.mxu0 0.0
        %983 = vmatpush1.xpose.msra.mxu0 0.0
        %984 = vmatprep.subr.mxu0 0.0
        %985 = vmatpush1.xpose.msra.mxu0 0.0
        %986 = vmatprep.subr.mxu0 0.0
        %987 = vmatpush1.xpose.msra.mxu0 0.0
        %988 = vmatprep.subr.mxu0 0.0
        %989 = vmatpush1.xpose.msra.mxu0 0.0
        %990 = vmatprep.subr.mxu0 0.0
        %991 = vmatpush1.xpose.msra.mxu0 0.0
        %992 = vmatprep.subr.mxu0 0.0
        %993 = vmatpush1.xpose.msra.mxu0 0.0
        %994 = vmatprep.subr.mxu0 0.0
        %995 = vmatpush1.xpose.msra.mxu0 0.0
        %996 = vmatprep.subr.mxu0 0.0
        %997 = vmatpush1.xpose.msra.mxu0 0.0
        %998 = vmatprep.subr.mxu0 0.0
        %999 = vmatpush1.xpose.msra.mxu0 0.0
        %1000 = vmatprep.subr.mxu0 0.0
        %1001 = vmatpush1.xpose.msra.mxu0 0.0
        %1002 = vmatprep.subr.mxu0 0.0
        %1003 = vmatpush1.xpose.msra.mxu0 0.0
        %1004 = vmatprep.subr.mxu0 0.0
        %1005 = vmatpush1.xpose.msra.mxu0 0.0
        %1006 = vmatprep.subr.mxu0 0.0
        %1007 = vmatpush1.xpose.msra.mxu0 0.0
        %1008 = vmatprep.subr.mxu0 0.0
        %1009 = vmatpush1.xpose.msra.mxu0 0.0
        %1010 = vmatprep.mubr.f32.mxu0 0.0
        %1011 = vmatmul.mubr.f32.gmra.mrb[0].mxu0 %v938
        %v1012 = vpop.f32.mrb[0].mxu0
        %v1013 = vadd.f32 0.0, %v1012
        %v1014 = vpop.f32.mrb[0].mxu0
        %1015 = vmatprep.mubr.f32.mxu0 0.0
        %1016 = vmatmul.mubr.f32.gmra.mrb[0].mxu0 %v940
        %v1017 = vpop.f32.mrb[0].mxu0
        %v1018 = vadd.f32 0.0, %v1017
        %v1019 = vpop.f32.mrb[0].mxu0
        %1020 = vdwg.mxu0
        %v1021 = vmul.f32 %v1013, 0.25
        %v1022 = vmul.f32 %v1018, 0.25
        %v1023 = vsel %vm648, %v1021, -inf
        %1024 = vmax.xlane.f32.xlu0 %v1023
        %v1025 = vpop.xlane.xlu0 %1024
        %v1026 = vsel %vm648, %v1022, -inf
        %1027 = vmax.xlane.f32.xlu0 %v1026
        %v1028 = vpop.xlane.xlu0 %1027
        %v1029 = vsub.f32 %v1021, %v1025
        %v1030 = vsub.f32 %v1022, %v1028
        %v1031 = vmul.f32 %v1029, 1.442695
        %v1032 = vpow.pop %v1031
        %v1033 = vmul.f32 %v1030, 1.442695
        %v1034 = vpow.pop %v1033
        %v1035 = vsel %vm648, %v1032, 0.0
        %1036 = vadd.xlane.f32.xlu0 %v1035
        %v1037 = vpop.xlane.xlu0 %1036
        %v1038 = vsel %vm648, %v1034, 0.0
        %1039 = vadd.xlane.f32.xlu0 %v1038
        %v1040 = vpop.xlane.xlu0 %1039
        %1041 = vrot.lane.b32.xlu0 %v634, 48
        %v1042 = vpop.permute.xlu0 %1041
        %1043 = vrot.lane.b32.xlu0 %v639, 48
        %v1044 = vpop.permute.xlu0 %1043
        %v1048 = vsel %vm648, %v1032, 0
        %v1051 = vsel %vm648, %v1034, 0
        %1053 = vmatprep.subr.mxu0 0.0
        %1054 = vmatpush1.msra.mxu0 %v1042
        %1055 = vmatprep.subr.mxu0 0.0
        %1056 = vmatpush1.msra.mxu0 %v1044
        %1057 = vmatprep.subr.mxu0 0.0
        %1058 = vmatpush1.msra.mxu0 0.0
        %1059 = vmatprep.subr.mxu0 0.0
        %1060 = vmatpush1.msra.mxu0 0.0
        %1061 = vmatprep.subr.mxu0 0.0
        %1062 = vmatpush1.msra.mxu0 0.0
        %1063 = vmatprep.subr.mxu0 0.0
        %1064 = vmatpush1.msra.mxu0 0.0
        %1065 = vmatprep.subr.mxu0 0.0
        %1066 = vmatpush1.msra.mxu0 0.0
        %1067 = vmatprep.subr.mxu0 0.0
        %1068 = vmatpush1.msra.mxu0 0.0
        %1069 = vmatprep.subr.mxu0 0.0
        %1070 = vmatpush1.msra.mxu0 0.0
        %1071 = vmatprep.subr.mxu0 0.0
        %1072 = vmatpush1.msra.mxu0 0.0
        %1073 = vmatprep.subr.mxu0 0.0
        %1074 = vmatpush1.msra.mxu0 0.0
        %1075 = vmatprep.subr.mxu0 0.0
        %1076 = vmatpush1.msra.mxu0 0.0
        %1077 = vmatprep.subr.mxu0 0.0
        %1078 = vmatpush1.msra.mxu0 0.0
        %1079 = vmatprep.subr.mxu0 0.0
        %1080 = vmatpush1.msra.mxu0 0.0
        %1081 = vmatprep.subr.mxu0 0.0
        %1082 = vmatpush1.msra.mxu0 0.0
        %1083 = vmatprep.subr.mxu0 0.0
        %1084 = vmatpush1.msra.mxu0 0.0
        %1085 = vmatprep.subr.mxu0 0.0
        %1086 = vmatpush1.msra.mxu0 0.0
        %1087 = vmatprep.subr.mxu0 0.0
        %1088 = vmatpush1.msra.mxu0 0.0
        %1089 = vmatprep.subr.mxu0 0.0
        %1090 = vmatpush1.msra.mxu0 0.0
        %1091 = vmatprep.subr.mxu0 0.0
        %1092 = vmatpush1.msra.mxu0 0.0
        %1093 = vmatprep.subr.mxu0 0.0
        %1094 = vmatpush1.msra.mxu0 0.0
        %1095 = vmatprep.subr.mxu0 0.0
        %1096 = vmatpush1.msra.mxu0 0.0
        %1097 = vmatprep.subr.mxu0 0.0
        %1098 = vmatpush1.msra.mxu0 0.0
        %1099 = vmatprep.subr.mxu0 0.0
        %1100 = vmatpush1.msra.mxu0 0.0
        %1101 = vmatprep.subr.mxu0 0.0
        %1102 = vmatpush1.msra.mxu0 0.0
        %1103 = vmatprep.subr.mxu0 0.0
        %1104 = vmatpush1.msra.mxu0 0.0
        %1105 = vmatprep.subr.mxu0 0.0
        %1106 = vmatpush1.msra.mxu0 0.0
        %1107 = vmatprep.subr.mxu0 0.0
        %1108 = vmatpush1.msra.mxu0 0.0
        %1109 = vmatprep.subr.mxu0 0.0
        %1110 = vmatpush1.msra.mxu0 0.0
        %1111 = vmatprep.subr.mxu0 0.0
        %1112 = vmatpush1.msra.mxu0 0.0
        %1113 = vmatprep.subr.mxu0 0.0
        %1114 = vmatpush1.msra.mxu0 0.0
        %1115 = vmatprep.subr.mxu0 0.0
        %1116 = vmatpush1.msra.mxu0 0.0
        %1117 = vmatprep.mubr.f32.mxu0 0.0
        %1118 = vmatmul.mubr.f32.gmra.mrb[0].mxu0 %v1048
        %v1119 = vpop.f32.mrb[0].mxu0
        %v1120 = vadd.f32 0.0, %v1119
        %v1121 = vpop.f32.mrb[0].mxu0
        %1122 = vmatprep.mubr.f32.mxu0 0.0
        %1123 = vmatmul.mubr.f32.gmra.mrb[0].mxu0 %v1051
        %v1124 = vpop.f32.mrb[0].mxu0
        %v1125 = vadd.f32 0.0, %v1124
        %v1126 = vpop.f32.mrb[0].mxu0
        %1127 = vdwg.mxu0
        %v1128 = vrcp.pop %v1037
        %v1129 = vrcp.pop %v1040
        %v1130 = vmul.f32 %v1120, %v1128
        %v1131 = vmul.f32 %v1125, %v1129
        %v1133 = vsel %vm648, %v1130, 0
        %v1136 = vsel %vm648, %v1131, 0
        %1138 = vmatprep.subr.mxu0 0.0
        %1139 = vmatpush1.msra.mxu0 %v553
        %1140 = vmatprep.subr.mxu0 0.0
        %1141 = vmatpush1.msra.mxu0 %v554
        %1142 = vmatprep.subr.mxu0 0.0
        %1143 = vmatpush1.msra.mxu0 0.0
        %1144 = vmatprep.subr.mxu0 0.0
        %1145 = vmatpush1.msra.mxu0 0.0
        %1146 = vmatprep.subr.mxu0 0.0
        %1147 = vmatpush1.msra.mxu0 0.0
        %1148 = vmatprep.subr.mxu0 0.0
        %1149 = vmatpush1.msra.mxu0 0.0
        %1150 = vmatprep.subr.mxu0 0.0
        %1151 = vmatpush1.msra.mxu0 0.0
        %1152 = vmatprep.subr.mxu0 0.0
        %1153 = vmatpush1.msra.mxu0 0.0
        %1154 = vmatprep.subr.mxu0 0.0
        %1155 = vmatpush1.msra.mxu0 0.0
        %1156 = vmatprep.subr.mxu0 0.0
        %1157 = vmatpush1.msra.mxu0 0.0
        %1158 = vmatprep.subr.mxu0 0.0
        %1159 = vmatpush1.msra.mxu0 0.0
        %1160 = vmatprep.subr.mxu0 0.0
        %1161 = vmatpush1.msra.mxu0 0.0
        %1162 = vmatprep.subr.mxu0 0.0
        %1163 = vmatpush1.msra.mxu0 0.0
        %1164 = vmatprep.subr.mxu0 0.0
        %1165 = vmatpush1.msra.mxu0 0.0
        %1166 = vmatprep.subr.mxu0 0.0
        %1167 = vmatpush1.msra.mxu0 0.0
        %1168 = vmatprep.subr.mxu0 0.0
        %1169 = vmatpush1.msra.mxu0 0.0
        %1170 = vmatprep.subr.mxu0 0.0
        %1171 = vmatpush1.msra.mxu0 0.0
        %1172 = vmatprep.subr.mxu0 0.0
        %1173 = vmatpush1.msra.mxu0 0.0
        %1174 = vmatprep.subr.mxu0 0.0
        %1175 = vmatpush1.msra.mxu0 0.0
        %1176 = vmatprep.subr.mxu0 0.0
        %1177 = vmatpush1.msra.mxu0 0.0
        %1178 = vmatprep.subr.mxu0 0.0
        %1179 = vmatpush1.msra.mxu0 0.0
        %1180 = vmatprep.subr.mxu0 0.0
        %1181 = vmatpush1.msra.mxu0 0.0
        %1182 = vmatprep.subr.mxu0 0.0
        %1183 = vmatpush1.msra.mxu0 0.0
        %1184 = vmatprep.subr.mxu0 0.0
        %1185 = vmatpush1.msra.mxu0 0.0
        %1186 = vmatprep.subr.mxu0 0.0
        %1187 = vmatpush1.msra.mxu0 0.0
        %1188 = vmatprep.subr.mxu0 0.0
        %1189 = vmatpush1.msra.mxu0 0.0
        %1190 = vmatprep.subr.mxu0 0.0
        %1191 = vmatpush1.msra.mxu0 0.0
        %1192 = vmatprep.subr.mxu0 0.0
        %1193 = vmatpush1.msra.mxu0 0.0
        %1194 = vmatprep.subr.mxu0 0.0
        %1195 = vmatpush1.msra.mxu0 0.0
        %1196 = vmatprep.subr.mxu0 0.0
        %1197 = vmatpush1.msra.mxu0 0.0
        %1198 = vmatprep.subr.mxu0 0.0
        %1199 = vmatpush1.msra.mxu0 0.0
        %1200 = vmatprep.subr.mxu0 0.0
        %1201 = vmatpush1.msra.mxu0 0.0
        %1202 = vmatprep.mubr.f32.mxu0 0.0
        %1203 = vmatmul.mubr.f32.gmra.mrb[0].mxu0 %v1133
        %v1204 = vpop.f32.mrb[0].mxu0
        %v1205 = vadd.f32 0.0, %v1204
        %v1206 = vpop.f32.mrb[0].mxu0
        %1207 = vmatprep.mubr.f32.mxu0 0.0
        %1208 = vmatmul.mubr.f32.gmra.mrb[0].mxu0 %v1136
        %v1209 = vpop.f32.mrb[0].mxu0
        %v1210 = vadd.f32 0.0, %v1209
        %v1211 = vpop.f32.mrb[0].mxu0
        %1212 = vdwg.mxu0
        %v1213 = vadd.f32 %v928, %v1205
        %v1214 = vadd.f32 %v929, %v1210
        %v1215 = vadd.f32 %v498, %v1213
        %v1216 = vadd.f32 %v503, %v1214
        %v1217 = vsel %vm506, %v1215, 0.0
        %1218 = vadd.xlane.f32.xlu0 %v1217
        %v1219 = vpop.xlane.xlu0 %1218
        %v1220 = vsel %vm506, %v1216, 0.0
        %1221 = vadd.xlane.f32.xlu0 %v1220
        %v1222 = vpop.xlane.xlu0 %1221
        %v1223 = vmul.f32 %v1219, %v513
        %v1224 = vmul.f32 %v1222, %v513
        %v1225 = vsub.f32 %v1215, %v1223
        %v1226 = vsub.f32 %v1216, %v1224
        %v1227 = vmul.f32 %v1225, %v1225
        %v1228 = vmul.f32 %v1226, %v1226
        %v1229 = vsel %vm506, %v1227, 0.0
        %1230 = vadd.xlane.f32.xlu0 %v1229
        %v1231 = vpop.xlane.xlu0 %1230
        %v1232 = vsel %vm506, %v1228, 0.0
        %1233 = vadd.xlane.f32.xlu0 %v1232
        %v1234 = vpop.xlane.xlu0 %1233
        %v1235 = vmul.f32 %v1231, %v513
        %v1236 = vmul.f32 %v1234, %v513
        %v1237 = vadd.f32 %v1235, 1e-06
        %v1238 = vadd.f32 %v1236, 1e-06
        %v1239 = vrsqrt.pop %v1237
        %v1240 = vrsqrt.pop %v1238
        %v1241 = vmul.f32 %v1225, %v1239
        %v1242 = vmul.f32 %v1226, %v1240
        %v1243 = vlaneseq
        %v1244 = vshrl.u32 %v1243, 7
        %v1245 = vsub.s32 3, %v1244
        %v1246 = vrot.slane %v413, %v1245
        %v1247 = vmul.f32 %v1241, %v1246
        %v1248 = vmul.f32 %v1242, %v1246
        %v1249 = vlaneseq
        %v1250 = vshrl.u32 %v1249, 7
        %v1251 = vsub.s32 4, %v1250
        %v1252 = vrot.slane %v413, %v1251
        %v1253 = vadd.f32 %v1247, %v1252
        %v1254 = vadd.f32 %v1248, %v1252
        %v1255 = vld [vmem:[%s7] sm:$0xff]
        %v1256 = vld [vmem:[%s7 + $0x8] sm:$0xff]
        %v1257 = vld [vmem:[%s7 + $0x10] sm:$0xff]
        %v1258 = vld [vmem:[%s7 + $0x18] sm:$0xff]
        %v1259 = vld [vmem:[%s8] sm:$0x1]
        %v1261 = vlaneseq
        %v1262 = vshrl.u32 %v1261, 7
        %v1263 = vsub.s32 0, %v1262
        %v1264 = vrot.slane %v1259, %v1263
        %v1267 = vsel %vm506, %v1253, 0
        %v1270 = vsel %vm506, %v1254, 0
        %1272 = vmatprep.subr.mxu0 0.0
        %1273 = vmatpush1.msra.mxu0 %v1255
        %1274 = vmatprep.subr.mxu0 0.0
        %1275 = vmatpush1.msra.mxu0 %v1256
        %1276 = vmatprep.subr.mxu0 0.0
        %1277 = vmatpush1.msra.mxu0 %v1257
        %1278 = vmatprep.subr.mxu0 0.0
        %1279 = vmatpush1.msra.mxu0 %v1258
        %1280 = vmatprep.subr.mxu0 0.0
        %1281 = vmatpush1.msra.mxu0 0.0
        %1282 = vmatprep.subr.mxu0 0.0
        %1283 = vmatpush1.msra.mxu0 0.0
        %1284 = vmatprep.subr.mxu0 0.0
        %1285 = vmatpush1.msra.mxu0 0.0
        %1286 = vmatprep.subr.mxu0 0.0
        %1287 = vmatpush1.msra.mxu0 0.0
        %1288 = vmatprep.subr.mxu0 0.0
        %1289 = vmatpush1.msra.mxu0 0.0
        %1290 = vmatprep.subr.mxu0 0.0
        %1291 = vmatpush1.msra.mxu0 0.0
        %1292 = vmatprep.subr.mxu0 0.0
        %1293 = vmatpush1.msra.mxu0 0.0
        %1294 = vmatprep.subr.mxu0 0.0
        %1295 = vmatpush1.msra.mxu0 0.0
        %1296 = vmatprep.subr.mxu0 0.0
        %1297 = vmatpush1.msra.mxu0 0.0
        %1298 = vmatprep.subr.mxu0 0.0
        %1299 = vmatpush1.msra.mxu0 0.0
        %1300 = vmatprep.subr.mxu0 0.0
        %1301 = vmatpush1.msra.mxu0 0.0
        %1302 = vmatprep.subr.mxu0 0.0
        %1303 = vmatpush1.msra.mxu0 0.0
        %1304 = vmatprep.subr.mxu0 0.0
        %1305 = vmatpush1.msra.mxu0 0.0
        %1306 = vmatprep.subr.mxu0 0.0
        %1307 = vmatpush1.msra.mxu0 0.0
        %1308 = vmatprep.subr.mxu0 0.0
        %1309 = vmatpush1.msra.mxu0 0.0
        %1310 = vmatprep.subr.mxu0 0.0
        %1311 = vmatpush1.msra.mxu0 0.0
        %1312 = vmatprep.subr.mxu0 0.0
        %1313 = vmatpush1.msra.mxu0 0.0
        %1314 = vmatprep.subr.mxu0 0.0
        %1315 = vmatpush1.msra.mxu0 0.0
        %1316 = vmatprep.subr.mxu0 0.0
        %1317 = vmatpush1.msra.mxu0 0.0
        %1318 = vmatprep.subr.mxu0 0.0
        %1319 = vmatpush1.msra.mxu0 0.0
        %1320 = vmatprep.subr.mxu0 0.0
        %1321 = vmatpush1.msra.mxu0 0.0
        %1322 = vmatprep.subr.mxu0 0.0
        %1323 = vmatpush1.msra.mxu0 0.0
        %1324 = vmatprep.subr.mxu0 0.0
        %1325 = vmatpush1.msra.mxu0 0.0
        %1326 = vmatprep.subr.mxu0 0.0
        %1327 = vmatpush1.msra.mxu0 0.0
        %1328 = vmatprep.subr.mxu0 0.0
        %1329 = vmatpush1.msra.mxu0 0.0
        %1330 = vmatprep.subr.mxu0 0.0
        %1331 = vmatpush1.msra.mxu0 0.0
        %1332 = vmatprep.subr.mxu0 0.0
        %1333 = vmatpush1.msra.mxu0 0.0
        %1334 = vmatprep.subr.mxu0 0.0
        %1335 = vmatpush1.msra.mxu0 0.0
        %1336 = vmatprep.mubr.f32.mxu0 0.0
        %1337 = vmatmul.mubr.f32.gmra.mrb[0].mxu0 %v1267
        %v1338 = vpop.f32.mrb[0].mxu0
        %v1339 = vadd.f32 %v1264, %v1338
        %v1340 = vpop.f32.mrb[0].mxu0
        %1341 = vmatprep.mubr.f32.mxu0 0.0
        %1342 = vmatmul.mubr.f32.gmra.mrb[0].mxu0 %v1270
        %v1343 = vpop.f32.mrb[0].mxu0
        %v1344 = vadd.f32 %v1264, %v1343
        %v1345 = vpop.f32.mrb[0].mxu0
        %1346 = vdwg.mxu0
        %v1347 = vmul.f32 %v1339, %v1339
        %v1348 = vmul.f32 %v1344, %v1344
        %v1349 = vmul.f32 %v1339, %v1347
        %v1350 = vmul.f32 %v1344, %v1348
        %v1351 = vmul.f32 %v1349, 0.044715
        %v1352 = vmul.f32 %v1350, 0.044715
        %v1353 = vadd.f32 %v1339, %v1351
        %v1354 = vadd.f32 %v1344, %v1352
        %v1355 = vmul.f32 %v1353, 0.7978846
        %v1356 = vmul.f32 %v1354, 0.7978846
        %v1357 = vtanh.pop %v1355
        %v1358 = vtanh.pop %v1356
        %v1359 = vadd.f32 %v1357, 1.0
        %v1360 = vadd.f32 %v1358, 1.0
        %v1361 = vmul.f32 %v1359, 0.5
        %v1362 = vmul.f32 %v1360, 0.5
        %v1363 = vmul.f32 %v1339, %v1361
        %v1364 = vmul.f32 %v1344, %v1362
        %v1365 = vld [vmem:[%s9] sm:$0xff]
        %v1366 = vld [vmem:[%s9 + $0x8] sm:$0xff]
        %v1367 = vld [vmem:[%s9 + $0x10] sm:$0xff]
        %v1368 = vld [vmem:[%s9 + $0x18] sm:$0xff]
        %v1369 = vld [vmem:[%s9 + $0x20] sm:$0xff]
        %v1370 = vld [vmem:[%s9 + $0x28] sm:$0xff]
        %v1371 = vld [vmem:[%s9 + $0x30] sm:$0xff]
        %v1372 = vld [vmem:[%s9 + $0x38] sm:$0xff]
        %vm1373 = vcmask 523264
        %v1375 = vsel %vm1373, %v1363, 0
        %v1378 = vsel %vm1373, %v1364, 0
        %1380 = vmatprep.subr.mxu0 0.0
        %1381 = vmatpush1.msra.mxu0 %v1365
        %1382 = vmatprep.subr.mxu0 0.0
        %1383 = vmatpush1.msra.mxu0 %v1366
        %1384 = vmatprep.subr.mxu0 0.0
        %1385 = vmatpush1.msra.mxu0 %v1367
        %1386 = vmatprep.subr.mxu0 0.0
        %1387 = vmatpush1.msra.mxu0 %v1368
        %1388 = vmatprep.subr.mxu0 0.0
        %1389 = vmatpush1.msra.mxu0 %v1369
        %1390 = vmatprep.subr.mxu0 0.0
        %1391 = vmatpush1.msra.mxu0 %v1370
        %1392 = vmatprep.subr.mxu0 0.0
        %1393 = vmatpush1.msra.mxu0 %v1371
        %1394 = vmatprep.subr.mxu0 0.0
        %1395 = vmatpush1.msra.mxu0 %v1372
        %1396 = vmatprep.subr.mxu0 0.0
        %1397 = vmatpush1.msra.mxu0 0.0
        %1398 = vmatprep.subr.mxu0 0.0
        %1399 = vmatpush1.msra.mxu0 0.0
        %1400 = vmatprep.subr.mxu0 0.0
        %1401 = vmatpush1.msra.mxu0 0.0
        %1402 = vmatprep.subr.mxu0 0.0
        %1403 = vmatpush1.msra.mxu0 0.0
        %1404 = vmatprep.subr.mxu0 0.0
        %1405 = vmatpush1.msra.mxu0 0.0
        %1406 = vmatprep.subr.mxu0 0.0
        %1407 = vmatpush1.msra.mxu0 0.0
        %1408 = vmatprep.subr.mxu0 0.0
        %1409 = vmatpush1.msra.mxu0 0.0
        %1410 = vmatprep.subr.mxu0 0.0
        %1411 = vmatpush1.msra.mxu0 0.0
        %1412 = vmatprep.subr.mxu0 0.0
        %1413 = vmatpush1.msra.mxu0 0.0
        %1414 = vmatprep.subr.mxu0 0.0
        %1415 = vmatpush1.msra.mxu0 0.0
        %1416 = vmatprep.subr.mxu0 0.0
        %1417 = vmatpush1.msra.mxu0 0.0
        %1418 = vmatprep.subr.mxu0 0.0
        %1419 = vmatpush1.msra.mxu0 0.0
        %1420 = vmatprep.subr.mxu0 0.0
        %1421 = vmatpush1.msra.mxu0 0.0
        %1422 = vmatprep.subr.mxu0 0.0
        %1423 = vmatpush1.msra.mxu0 0.0
        %1424 = vmatprep.subr.mxu0 0.0
        %1425 = vmatpush1.msra.mxu0 0.0
        %1426 = vmatprep.subr.mxu0 0.0
        %1427 = vmatpush1.msra.mxu0 0.0
        %1428 = vmatprep.subr.mxu0 0.0
        %1429 = vmatpush1.msra.mxu0 0.0
        %1430 = vmatprep.subr.mxu0 0.0
        %1431 = vmatpush1.msra.mxu0 0.0
        %1432 = vmatprep.subr.mxu0 0.0
        %1433 = vmatpush1.msra.mxu0 0.0
        %1434 = vmatprep.subr.mxu0 0.0
        %1435 = vmatpush1.msra.mxu0 0.0
        %1436 = vmatprep.subr.mxu0 0.0
        %1437 = vmatpush1.msra.mxu0 0.0
        %1438 = vmatprep.subr.mxu0 0.0
        %1439 = vmatpush1.msra.mxu0 0.0
        %1440 = vmatprep.subr.mxu0 0.0
        %1441 = vmatpush1.msra.mxu0 0.0
        %1442 = vmatprep.subr.mxu0 0.0
        %1443 = vmatpush1.msra.mxu0 0.0
        %1444 = vmatprep.mubr.f32.mxu0 0.0
        %1445 = vmatmul.mubr.f32.gmra.mrb[0].mxu0 %v1375
        %v1446 = vpop.f32.mrb[0].mxu0
        %v1447 = vadd.f32 0.0, %v1446
        %v1448 = vpop.f32.mrb[0].mxu0
        %1449 = vmatprep.mubr.f32.mxu0 0.0
        %1450 = vmatmul.mubr.f32.gmra.mrb[0].mxu0 %v1378
        %v1451 = vpop.f32.mrb[0].mxu0
        %v1452 = vadd.f32 0.0, %v1451
        %v1453 = vpop.f32.mrb[0].mxu0
        %1454 = vdwg.mxu0
        %v1455 = vadd.f32 %v1215, %v1447
        %v1456 = vadd.f32 %v1216, %v1452
        %v1457 = vlaneseq
        %v1458 = vshrl.u32 %v1457, 7
        %v1459 = vsub.s32 5, %v1458
        %v1460 = vrot.slane %v413, %v1459
        %v1461 = vadd.f32 %v1455, %v1460
        %v1462 = vadd.f32 %v1456, %v1460
        %v1463 = vld [vmem:[%s10] sm:$0xff]
        %v1464 = vld [vmem:[%s10 + $0x8] sm:$0xff]
        %v1465 = vld [vmem:[%s10 + $0x10] sm:$0xff]
        %v1466 = vld [vmem:[%s10 + $0x18] sm:$0xff]
        %v1467 = vlaneseq
        %v1468 = vshrl.u32 %v1467, 7
        %v1469 = vsub.s32 6, %v1468
        %v1470 = vrot.slane %v413, %v1469
        %v1472 = vsel %vm506, %v1461, 0
        %v1475 = vsel %vm506, %v1462, 0
        %1477 = vmatprep.subr.mxu0 0.0
        %1478 = vmatpush1.msra.mxu0 %v1463
        %1479 = vmatprep.subr.mxu0 0.0
        %1480 = vmatpush1.msra.mxu0 %v1464
        %1481 = vmatprep.subr.mxu0 0.0
        %1482 = vmatpush1.msra.mxu0 %v1465
        %1483 = vmatprep.subr.mxu0 0.0
        %1484 = vmatpush1.msra.mxu0 %v1466
        %1485 = vmatprep.subr.mxu0 0.0
        %1486 = vmatpush1.msra.mxu0 0.0
        %1487 = vmatprep.subr.mxu0 0.0
        %1488 = vmatpush1.msra.mxu0 0.0
        %1489 = vmatprep.subr.mxu0 0.0
        %1490 = vmatpush1.msra.mxu0 0.0
        %1491 = vmatprep.subr.mxu0 0.0
        %1492 = vmatpush1.msra.mxu0 0.0
        %1493 = vmatprep.subr.mxu0 0.0
        %1494 = vmatpush1.msra.mxu0 0.0
        %1495 = vmatprep.subr.mxu0 0.0
        %1496 = vmatpush1.msra.mxu0 0.0
        %1497 = vmatprep.subr.mxu0 0.0
        %1498 = vmatpush1.msra.mxu0 0.0
        %1499 = vmatprep.subr.mxu0 0.0
        %1500 = vmatpush1.msra.mxu0 0.0
        %1501 = vmatprep.subr.mxu0 0.0
        %1502 = vmatpush1.msra.mxu0 0.0
        %1503 = vmatprep.subr.mxu0 0.0
        %1504 = vmatpush1.msra.mxu0 0.0
        %1505 = vmatprep.subr.mxu0 0.0
        %1506 = vmatpush1.msra.mxu0 0.0
        %1507 = vmatprep.subr.mxu0 0.0
        %1508 = vmatpush1.msra.mxu0 0.0
        %1509 = vmatprep.subr.mxu0 0.0
        %1510 = vmatpush1.msra.mxu0 0.0
        %1511 = vmatprep.subr.mxu0 0.0
        %1512 = vmatpush1.msra.mxu0 0.0
        %1513 = vmatprep.subr.mxu0 0.0
        %1514 = vmatpush1.msra.mxu0 0.0
        %1515 = vmatprep.subr.mxu0 0.0
        %1516 = vmatpush1.msra.mxu0 0.0
        %1517 = vmatprep.subr.mxu0 0.0
        %1518 = vmatpush1.msra.mxu0 0.0
        %1519 = vmatprep.subr.mxu0 0.0
        %1520 = vmatpush1.msra.mxu0 0.0
        %1521 = vmatprep.subr.mxu0 0.0
        %1522 = vmatpush1.msra.mxu0 0.0
        %1523 = vmatprep.subr.mxu0 0.0
        %1524 = vmatpush1.msra.mxu0 0.0
        %1525 = vmatprep.subr.mxu0 0.0
        %1526 = vmatpush1.msra.mxu0 0.0
        %1527 = vmatprep.subr.mxu0 0.0
        %1528 = vmatpush1.msra.mxu0 0.0
        %1529 = vmatprep.subr.mxu0 0.0
        %1530 = vmatpush1.msra.mxu0 0.0
        %1531 = vmatprep.subr.mxu0 0.0
        %1532 = vmatpush1.msra.mxu0 0.0
        %1533 = vmatprep.subr.mxu0 0.0
        %1534 = vmatpush1.msra.mxu0 0.0
        %1535 = vmatprep.subr.mxu0 0.0
        %1536 = vmatpush1.msra.mxu0 0.0
        %1537 = vmatprep.subr.mxu0 0.0
        %1538 = vmatpush1.msra.mxu0 0.0
        %1539 = vmatprep.subr.mxu0 0.0
        %1540 = vmatpush1.msra.mxu0 0.0
        %1541 = vmatprep.mubr.f32.mxu0 0.0
        %1542 = vmatmul.mubr.f32.gmra.mrb[0].mxu0 %v1472
        %v1543 = vpop.f32.mrb[0].mxu0
        %v1544 = vadd.f32 %v1470, %v1543
        %v1545 = vpop.f32.mrb[0].mxu0
        %1546 = vmatprep.mubr.f32.mxu0 0.0
        %1547 = vmatmul.mubr.f32.gmra.mrb[0].mxu0 %v1475
        %v1548 = vpop.f32.mrb[0].mxu0
        %v1549 = vadd.f32 %v1470, %v1548
        %v1550 = vpop.f32.mrb[0].mxu0
        %1551 = vdwg.mxu0
        %1552 = vst.msk [vmem:[%s407] sm:$0xff] %vm506, %v1544
        %1553 = vst.msk [vmem:[%s407 + $0x8] sm:$0xff] %vm506, %v1549
        %s1554 = sand.u32 %s271, 1
        %s1555 = scalar_lea.sflag [#allocation4], %s1554
        %s1556 = sand.u32 %s271, 1
        %s1557 = smul.addr %s1556, 16
        %s1558 = scalar_lea.vmem [#allocation7], %s1557
        // Predicated region
        $region73: #{tpu_custom_call.1} parent=63 // pred_check
          %p1559 = pneg %p281
        $region74: #{tpu_custom_call.1} parent=63 // pred_check_branch
          %1561 = sbr.rel (%p1559) target = $region76
        $region75: #{tpu_custom_call.1} parent=63 // pred_region
          %s1563 = ssub.s32 256, 256
          %1564 = vsyncadd %s1555, %s1563
          %s1565 = smul.addr %s27, 2
          %s1566 = smul.addr %s1565, 128
          %s1567 = scalar_lea.hbm %s11, %s1566
          %s1568 = sshll.u32 %s1558, 4
          %s1569 = int_to_ptr.vmem [resolvable:$true] %s1568
          %1574 = dma.vmem_to_hbm [thread:$0]  %s1569, 256, %s1567, %s1555, 128, 128, 8
        $region76: #{tpu_custom_call.1} parent=63 // pred_fallthru
          _
      $region64: #{tpu_custom_call.1} parent=5 // pred_fallthru
        _
      %p1575 = scmp.le.s32.totalorder 2, %s22
      // Predicated region
      $region77: #{tpu_custom_call.1} parent=5 // pred_check
        %p1576 = pneg %p1575
      $region78: #{tpu_custom_call.1} parent=5 // pred_check_branch
        %1578 = sbr.rel (%p1576) target = $region80
      $region79: #{tpu_custom_call.1} parent=5 // pred_region
        %s1579 = ssub.s32 %s22, 2
        // Predicated region
        $region81: #{tpu_custom_call.1} parent=79 // pred_check
          %p1580 = pneg %p287
        $region82: #{tpu_custom_call.1} parent=79 // pred_check_branch
          %1582 = sbr.rel (%p1580) target = $region84
        $region83: #{tpu_custom_call.1} parent=79 // pred_region
          %s1583 = sand.u32 %s272, 1
          %s1584 = scalar_lea.sflag [#allocation4], %s1583
          %s1585 = sand.u32 %s272, 1
          %s1586 = smul.addr %s1585, 16
          %s1587 = scalar_lea.vmem [#allocation7], %s1586
          %1588 = dma.done %s1584, 256
        $region84: #{tpu_custom_call.1} parent=79 // pred_fallthru
          _
      $region80: #{tpu_custom_call.1} parent=5 // pred_fallthru
        _
    $region6: #{tpu_custom_call.1} parent=1 // loop_footer
      %s26 = sadd.s32 1, %s22
    $region7: #{tpu_custom_call.1} parent=1 // loop_footer_branch
      %21 = sbr.rel target = $region3
    $region8: #{tpu_custom_call.1} parent=1 // loop_exit
      _
    %1589 = vsyncpa [#allocation3], 1
    %s1590 = scalar_lea.sflag [#allocation3], 1
    %1591 = vsyncpa %s1590, 1
    %1592 = vsyncpa [#allocation6], 1
    %1593 = vsyncpa [#allocation4], 1
    %s1594 = scalar_lea.sflag [#allocation4], 1
    %1595 = vsyncpa %s1594, 1

</llo_original>
